<compile_context>
chip_gen: v5e
topology: v5e:2x2
jax: 0.10.0
libtpu: 0.0.40
codegen_flags: <defaults>
</compile_context>

<pallas_src>
import math
import functools

import jax
import jax.numpy as jnp
from jax.experimental import pallas as pl
from jax.experimental.pallas import tpu as pltpu


def _round_up(n, m):
    return ((n + m - 1) // m) * m


def _full_vmem_spec(shape):
    # Whole array as a single block (block == array shape -> no (8,128) rule).
    return pl.BlockSpec(shape, lambda: (0,) * len(shape))


# -----------------------------------------------------------------------------
# Fused forward: stacked GRU + reshape + Linear in ONE pallas_call.
# Gate order follows PyTorch: [r, z, n].
# -----------------------------------------------------------------------------
def simple_gru_forward(x, params, hidden_size, *, compute_dtype=jnp.float32):
    """x: (S, B, I) f32, time-major (PyTorch nn.GRU default).  Returns (B, T).

    compute_dtype: dtype of the MXU operands (weights / activations feeding the
    matmuls).  Gate math and accumulation always stay f32.  Use jnp.bfloat16 on
    v6e / v7x for MXU throughput; keep f32 if exactness is required.
    """
    S, B, I = x.shape
    H = hidden_size
    num_layers = len(params["gru_layers"])
    T = params["fc_w"].shape[0]

    cdt = compute_dtype
    B_pad = _round_up(B, 8)      # f32 sublane alignment for per-step slices/stores
    T_pad = _round_up(T, 128)    # lane-dense output store

    # ---- wrapper-side layout glue (padding / fusing / transposes only) ------
    # Padded batch rows carry zero inputs; they never contaminate real rows
    # (all matmuls are row-independent) and are sliced off after the call.
    x_pad = jnp.zeros((S, B_pad, I), jnp.float32).at[:, :B, :].set(x)
    x2d = x_pad.reshape(S * B_pad, I)                 # row index = t*B_pad + b

    layer_ops, layer_specs = [], []
    for (w_ih, w_hh, b_ih, b_hh) in params["gru_layers"]:
        # PyTorch stacks gates [r; z; n] along dim 0, so the transposes are
        # already the fused (in, 3H) / (H, 3H) operands.
        w_i = w_ih.T.astype(cdt)                      # (in, 3H)
        w_h = w_hh.T.astype(cdt)                      # (H, 3H)
        # Bias pack (2, 3H), f32:
        #   row 0: [b_ir+b_hr, b_iz+b_hz, b_in]   -> added to the hoisted x-proj
        #   row 1: [0, 0, b_hn]                   -> added to h @ W_h, so the n
        #                                            gate keeps r*(h@W_hn + b_hn)
        b_in_row = jnp.concatenate([b_ih[:2 * H] + b_hh[:2 * H], b_ih[2 * H:]])
        b_hn_row = jnp.concatenate([jnp.zeros((2 * H,), jnp.float32), b_hh[2 * H:]])
        b_pack = jnp.stack([b_in_row, b_hn_row], axis=0)        # (2, 3H)
        layer_ops += [w_i, w_h, b_pack]
        layer_specs += [_full_vmem_spec(w_i.shape),
                        _full_vmem_spec(w_h.shape),
                        _full_vmem_spec(b_pack.shape)]

    fc_w_t = jnp.zeros((S * H, T_pad), cdt).at[:, :T].set(params["fc_w"].T.astype(cdt))
    fc_b2 = jnp.zeros((1, T_pad), jnp.float32).at[:, :T].set(params["fc_b"].reshape(1, T))

    n_per_layer = 3

    def kernel(*refs):
        x_ref = refs[0]
        fc_w_ref = refs[1 + num_layers * n_per_layer]
        fc_b_ref = refs[2 + num_layers * n_per_layer]
        out_ref = refs[3 + num_layers * n_per_layer]
        seq_ref = refs[4 + num_layers * n_per_layer]   # VMEM (S*B_pad, H) f32
        slab_ref = refs[5 + num_layers * n_per_layer]  # VMEM (B_pad, S*H) f32

        inp = x_ref[...].astype(cdt)                   # (S*B_pad, in)
        for layer in range(num_layers):
            base = 1 + layer * n_per_layer
            w_i_ref, w_h_ref, b_ref = refs[base:base + n_per_layer]

            # Hoisted input projection: ONE fused (., 3H) matmul over the whole
            # sequence; only h @ W_h remains on the serial critical path.
            gi = (jnp.dot(inp, w_i_ref[...], preferred_element_type=jnp.float32)
                  + b_ref[0:1, :])                     # (S*B_pad, 3H) f32

            w_h_v = w_h_ref[...]                       # (H, 3H) cdt
            bhn3 = jnp.broadcast_to(b_ref[1:2, :], (B_pad, 3 * H))  # hoisted

            h = jnp.zeros((B_pad, H), jnp.float32)     # h0 = 0 (as in PyTorch)
            h_c = h.astype(cdt)
            # S is small & static -> fully unrolled.  (lax.fori_loop at prod S.)
            for t in range(S):
                lo = t * B_pad                         # multiple of 8 -> aligned
                i_rzn = gi[lo:lo + B_pad, :]           # (B_pad, 3H)
                gh = jnp.dot(h_c, w_h_v,
                             preferred_element_type=jnp.float32) + bhn3
                rz = jax.nn.sigmoid(i_rzn[:, :2 * H] + gh[:, :2 * H])
                r = rz[:, :H]
                z = rz[:, H:]
                n = jnp.tanh(i_rzn[:, 2 * H:] + r * gh[:, 2 * H:])
                h = (1.0 - z) * n + z * h
                h_c = h.astype(cdt)
                seq_ref[lo:lo + B_pad, :] = h          # aligned VMEM store

            if layer + 1 < num_layers:
                inp = seq_ref[...].astype(cdt)         # next layer input, VMEM-resident

        # ---- FC head: one (B_pad, S*H) @ (S*H, T_pad) matmul -----------------
        # PyTorch does a RAW (S,B,H) -> (B, S*H) reshape: output row p, chunk k
        # is flat row m = p*S + k of the UNPADDED (S*B, H) sequence, i.e.
        # (t, b) = divmod(m, B)  ->  padded seq_ref row t*B_pad + b.
        # Build that slab once (a single permuting copy), then one matmul and
        # one lane-dense store.
        slab_ref[...] = jnp.zeros_like(slab_ref)       # zero padded rows
        seq = seq_ref[...]                             # (S*B_pad, H) top layer
        for p in range(B):
            for k in range(S):
                t_idx, b_idx = divmod(p * S + k, B)
                r_idx = t_idx * B_pad + b_idx
                slab_ref[p:p + 1, k * H:(k + 1) * H] = seq[r_idx:r_idx + 1, :]

        out = jnp.dot(slab_ref[...].astype(cdt), fc_w_ref[...],
                      preferred_element_type=jnp.float32) + fc_b_ref[...]
        out_ref[...] = out.astype(out_ref.dtype)       # single unmasked store

    in_specs = ([_full_vmem_spec(x2d.shape)] + layer_specs
                + [_full_vmem_spec(fc_w_t.shape), _full_vmem_spec(fc_b2.shape)])

    out_pad = pl.pallas_call(
        kernel,
        out_shape=jax.ShapeDtypeStruct((B_pad, T_pad), jnp.float32),
        in_specs=in_specs,
        out_specs=_full_vmem_spec((B_pad, T_pad)),
        scratch_shapes=[pltpu.VMEM((S * B_pad, H), jnp.float32),
                        pltpu.VMEM((B_pad, S * H), jnp.float32)],
        compiler_params=pltpu.CompilerParams(
            vmem_limit_bytes=32 * 1024 * 1024),
    )(x2d, *layer_ops, fc_w_t, fc_b2)

    return out_pad[:B, :T]


# -----------------------------------------------------------------------------
# Pure-JAX reference (for correctness check).
# -----------------------------------------------------------------------------
def reference_forward(x, params, hidden_size):
    H = hidden_size

    def layer(inp, w_ih, w_hh, b_ih, b_hh):
        B = inp.shape[1]

        def step(h, x_t):
            gi = x_t @ w_ih.T + b_ih
            gh = h @ w_hh.T + b_hh
            r = jax.nn.sigmoid(gi[:, :H] + gh[:, :H])
            z = jax.nn.sigmoid(gi[:, H:2 * H] + gh[:, H:2 * H])
            n = jnp.tanh(gi[:, 2 * H:] + r * gh[:, 2 * H:])
            h_new = (1.0 - z) * n + z * h
            return h_new, h_new

        h0 = jnp.zeros((B, H), jnp.float32)
        _, outs = jax.lax.scan(step, h0, inp)
        return outs

    out = x
    for (w_ih, w_hh, b_ih, b_hh) in params["gru_layers"]:
        out = layer(out, w_ih, w_hh, b_ih, b_hh)
    out = out.reshape(x.shape[1], -1)          # exact PyTorch reshape semantics
    return out @ params["fc_w"].T + params["fc_b"]


# -----------------------------------------------------------------------------
# Deterministic parameter init (PyTorch-style U(-1/sqrt(H), 1/sqrt(H)) shapes).
# -----------------------------------------------------------------------------
def init_params(key, input_size, hidden_size, seq_length, num_layers, target_length):
    H = hidden_size
    k = 1.0 / math.sqrt(H)
    layers = []
    for layer_idx in range(num_layers):
        in_sz = input_size if layer_idx == 0 else H
        key, k1, k2, k3, k4 = jax.random.split(key, 5)
        w_ih = jax.random.uniform(k1, (3 * H, in_sz), jnp.float32, -k, k)
        w_hh = jax.random.uniform(k2, (3 * H, H), jnp.float32, -k, k)
        b_ih = jax.random.uniform(k3, (3 * H,), jnp.float32, -k, k)
        b_hh = jax.random.uniform(k4, (3 * H,), jnp.float32, -k, k)
        layers.append((w_ih, w_hh, b_ih, b_hh))

    fc_in = H * seq_length
    kf = 1.0 / math.sqrt(fc_in)
    key, k5, k6 = jax.random.split(key, 3)
    fc_w = jax.random.uniform(k5, (target_length, fc_in), jnp.float32, -kf, kf)
    fc_b = jax.random.uniform(k6, (target_length,), jnp.float32, -kf, kf)
    return {"gru_layers": layers, "fc_w": fc_w, "fc_b": fc_b}


if __name__ == "__main__":
    # Small shapes consistent with the module's forward.
    input_size = 4
    hidden_size = 32
    seq_length = 8
    num_layers = 2
    target_length = 8
    batch = 2

    key = jax.random.PRNGKey(0)
    key, kx = jax.random.split(key)
    x = jax.random.normal(kx, (seq_length, batch, input_size), jnp.float32)

    params = init_params(key, input_size, hidden_size, seq_length, num_layers,
                         target_length)

    ref = reference_forward(x, params, hidden_size)

    # f32 MXU operands: exactness check.
    fwd_f32 = jax.jit(functools.partial(
        simple_gru_forward, hidden_size=hidden_size, compute_dtype=jnp.float32))
    out_f32 = jax.block_until_ready(fwd_f32(x, params))
    assert out_f32.shape == (batch, target_length), out_f32.shape
    assert jnp.allclose(out_f32, ref, atol=1e-4, rtol=1e-4), \
        f"f32 max abs err {jnp.max(jnp.abs(out_f32 - ref))}"

    # bf16 MXU operands (v6e/v7x recommendation); gate math stays f32.
    fwd_bf16 = jax.jit(functools.partial(
        simple_gru_forward, hidden_size=hidden_size, compute_dtype=jnp.bfloat16))
    out_bf16 = jax.block_until_ready(fwd_bf16(x, params))
    assert out_bf16.shape == (batch, target_length), out_bf16.shape
    assert jnp.allclose(out_bf16, ref, atol=3e-2, rtol=3e-2), \
        f"bf16 max abs err {jnp.max(jnp.abs(out_bf16 - ref))}"

    print("KERNEL_OK")
</pallas_src>

<mosaic_0001>
module attributes {stable_mosaic.version = 11 : i64} {
  func.func @kernel(%arg0: memref<64x4xf32, #tpu.memory_space<vmem>>, %arg1: memref<4x96xf32, #tpu.memory_space<vmem>>, %arg2: memref<32x96xf32, #tpu.memory_space<vmem>>, %arg3: memref<2x96xf32, #tpu.memory_space<vmem>>, %arg4: memref<32x96xf32, #tpu.memory_space<vmem>>, %arg5: memref<32x96xf32, #tpu.memory_space<vmem>>, %arg6: memref<2x96xf32, #tpu.memory_space<vmem>>, %arg7: memref<256x128xf32, #tpu.memory_space<vmem>>, %arg8: memref<1x128xf32, #tpu.memory_space<vmem>>, %arg9: memref<8x128xf32, #tpu.memory_space<vmem>>, %arg10: memref<64x32xf32, #tpu.memory_space<vmem>>, %arg11: memref<8x256xf32, #tpu.memory_space<vmem>>) attributes {dimension_semantics = [], scalar_prefetch = 0 : i64, scratch_operands = 2 : i64, tpu.core_type = #tpu.core_type<tc>} {
    %c0 = arith.constant 0 : index
    %c0_0 = arith.constant 0 : index
    %0 = vector.load %arg0[%c0, %c0_0] : memref<64x4xf32, #tpu.memory_space<vmem>>, vector<64x4xf32>
    %c0_1 = arith.constant 0 : index
    %c0_2 = arith.constant 0 : index
    %1 = vector.load %arg1[%c0_1, %c0_2] : memref<4x96xf32, #tpu.memory_space<vmem>>, vector<4x96xf32>
    %cst = arith.constant dense<0.000000e+00> : vector<64x96xf32>
    %2 = tpu.matmul %0, %1, %cst {dimension_numbers = #tpu.dot_dimension_numbers<[1], [0], [0], [1], [0, 0, 1, 1], [], []>} : vector<64x4xf32>, vector<4x96xf32>, vector<64x96xf32> -> vector<64x96xf32>
    %c0_3 = arith.constant 0 : index
    %c0_4 = arith.constant 0 : index
    %3 = vector.load %arg3[%c0_3, %c0_4] : memref<2x96xf32, #tpu.memory_space<vmem>>, vector<1x96xf32>
    %4 = vector.broadcast %3 : vector<1x96xf32> to vector<64x96xf32>
    %5 = arith.addf %2, %4 : vector<64x96xf32>
    %c0_5 = arith.constant 0 : index
    %c0_6 = arith.constant 0 : index
    %6 = vector.load %arg2[%c0_5, %c0_6] : memref<32x96xf32, #tpu.memory_space<vmem>>, vector<32x96xf32>
    %c1 = arith.constant 1 : index
    %c0_7 = arith.constant 0 : index
    %7 = vector.load %arg3[%c1, %c0_7] : memref<2x96xf32, #tpu.memory_space<vmem>>, vector<1x96xf32>
    %8 = vector.shape_cast %7 : vector<1x96xf32> to vector<1x96xf32>
    %9 = vector.broadcast %8 : vector<1x96xf32> to vector<8x96xf32>
    %cst_8 = arith.constant 0.000000e+00 : f32
    %10 = vector.broadcast %cst_8 : f32 to vector<8x32xf32>
    %11 = vector.extract_strided_slice %5 {offsets = [0, 0], sizes = [8, 96], strides = [1, 1]} : vector<64x96xf32> to vector<8x96xf32>
    %cst_9 = arith.constant dense<0.000000e+00> : vector<8x96xf32>
    %12 = tpu.matmul %10, %6, %cst_9 {dimension_numbers = #tpu.dot_dimension_numbers<[1], [0], [0], [1], [0, 0, 1, 1], [], []>} : vector<8x32xf32>, vector<32x96xf32>, vector<8x96xf32> -> vector<8x96xf32>
    %13 = arith.addf %12, %9 : vector<8x96xf32>
    %14 = vector.extract_strided_slice %11 {offsets = [0, 0], sizes = [8, 64], strides = [1, 1]} : vector<8x96xf32> to vector<8x64xf32>
    %15 = vector.extract_strided_slice %13 {offsets = [0, 0], sizes = [8, 64], strides = [1, 1]} : vector<8x96xf32> to vector<8x64xf32>
    %16 = arith.addf %14, %15 : vector<8x64xf32>
    %17 = arith.negf %16 : vector<8x64xf32>
    %18 = math.exp %17 : vector<8x64xf32>
    %cst_10 = arith.constant 1.000000e+00 : f32
    %19 = vector.broadcast %cst_10 : f32 to vector<8x64xf32>
    %20 = arith.addf %19, %18 : vector<8x64xf32>
    %21 = arith.divf %19, %20 : vector<8x64xf32>
    %22 = vector.extract_strided_slice %21 {offsets = [0, 0], sizes = [8, 32], strides = [1, 1]} : vector<8x64xf32> to vector<8x32xf32>
    %23 = vector.extract_strided_slice %21 {offsets = [0, 32], sizes = [8, 32], strides = [1, 1]} : vector<8x64xf32> to vector<8x32xf32>
    %24 = vector.extract_strided_slice %11 {offsets = [0, 64], sizes = [8, 32], strides = [1, 1]} : vector<8x96xf32> to vector<8x32xf32>
    %25 = vector.extract_strided_slice %13 {offsets = [0, 64], sizes = [8, 32], strides = [1, 1]} : vector<8x96xf32> to vector<8x32xf32>
    %26 = arith.mulf %22, %25 : vector<8x32xf32>
    %27 = arith.addf %24, %26 : vector<8x32xf32>
    %28 = math.tanh %27 : vector<8x32xf32>
    %cst_11 = arith.constant 1.000000e+00 : f32
    %29 = vector.broadcast %cst_11 : f32 to vector<8x32xf32>
    %30 = arith.subf %29, %23 : vector<8x32xf32>
    %31 = arith.mulf %30, %28 : vector<8x32xf32>
    %32 = arith.mulf %23, %10 : vector<8x32xf32>
    %33 = arith.addf %31, %32 : vector<8x32xf32>
    %c0_12 = arith.constant 0 : index
    %c0_13 = arith.constant 0 : index
    %34 = vector.load %arg10[%c0_12, %c0_13] : memref<64x32xf32, #tpu.memory_space<vmem>>, vector<8x32xf32>
    tpu.vector_store %arg10[%c0_12, %c0_13], %33 {strides = array<i32>} : memref<64x32xf32, #tpu.memory_space<vmem>>, vector<8x32xf32>,
    %35 = vector.extract_strided_slice %5 {offsets = [8, 0], sizes = [8, 96], strides = [1, 1]} : vector<64x96xf32> to vector<8x96xf32>
    %cst_14 = arith.constant dense<0.000000e+00> : vector<8x96xf32>
    %36 = tpu.matmul %33, %6, %cst_14 {dimension_numbers = #tpu.dot_dimension_numbers<[1], [0], [0], [1], [0, 0, 1, 1], [], []>} : vector<8x32xf32>, vector<32x96xf32>, vector<8x96xf32> -> vector<8x96xf32>
    %37 = arith.addf %36, %9 : vector<8x96xf32>
    %38 = vector.extract_strided_slice %35 {offsets = [0, 0], sizes = [8, 64], strides = [1, 1]} : vector<8x96xf32> to vector<8x64xf32>
    %39 = vector.extract_strided_slice %37 {offsets = [0, 0], sizes = [8, 64], strides = [1, 1]} : vector<8x96xf32> to vector<8x64xf32>
    %40 = arith.addf %38, %39 : vector<8x64xf32>
    %41 = arith.negf %40 : vector<8x64xf32>
    %42 = math.exp %41 : vector<8x64xf32>
    %cst_15 = arith.constant 1.000000e+00 : f32
    %43 = vector.broadcast %cst_15 : f32 to vector<8x64xf32>
    %44 = arith.addf %43, %42 : vector<8x64xf32>
    %45 = arith.divf %43, %44 : vector<8x64xf32>
    %46 = vector.extract_strided_slice %45 {offsets = [0, 0], sizes = [8, 32], strides = [1, 1]} : vector<8x64xf32> to vector<8x32xf32>
    %47 = vector.extract_strided_slice %45 {offsets = [0, 32], sizes = [8, 32], strides = [1, 1]} : vector<8x64xf32> to vector<8x32xf32>
    %48 = vector.extract_strided_slice %35 {offsets = [0, 64], sizes = [8, 32], strides = [1, 1]} : vector<8x96xf32> to vector<8x32xf32>
    %49 = vector.extract_strided_slice %37 {offsets = [0, 64], sizes = [8, 32], strides = [1, 1]} : vector<8x96xf32> to vector<8x32xf32>
    %50 = arith.mulf %46, %49 : vector<8x32xf32>
    %51 = arith.addf %48, %50 : vector<8x32xf32>
    %52 = math.tanh %51 : vector<8x32xf32>
    %cst_16 = arith.constant 1.000000e+00 : f32
    %53 = vector.broadcast %cst_16 : f32 to vector<8x32xf32>
    %54 = arith.subf %53, %47 : vector<8x32xf32>
    %55 = arith.mulf %54, %52 : vector<8x32xf32>
    %56 = arith.mulf %47, %33 : vector<8x32xf32>
    %57 = arith.addf %55, %56 : vector<8x32xf32>
    %c8 = arith.constant 8 : index
    %c0_17 = arith.constant 0 : index
    %58 = vector.load %arg10[%c8, %c0_17] : memref<64x32xf32, #tpu.memory_space<vmem>>, vector<8x32xf32>
    tpu.vector_store %arg10[%c8, %c0_17], %57 {strides = array<i32>} : memref<64x32xf32, #tpu.memory_space<vmem>>, vector<8x32xf32>,
    %59 = vector.extract_strided_slice %5 {offsets = [16, 0], sizes = [8, 96], strides = [1, 1]} : vector<64x96xf32> to vector<8x96xf32>
    %cst_18 = arith.constant dense<0.000000e+00> : vector<8x96xf32>
    %60 = tpu.matmul %57, %6, %cst_18 {dimension_numbers = #tpu.dot_dimension_numbers<[1], [0], [0], [1], [0, 0, 1, 1], [], []>} : vector<8x32xf32>, vector<32x96xf32>, vector<8x96xf32> -> vector<8x96xf32>
    %61 = arith.addf %60, %9 : vector<8x96xf32>
    %62 = vector.extract_strided_slice %59 {offsets = [0, 0], sizes = [8, 64], strides = [1, 1]} : vector<8x96xf32> to vector<8x64xf32>
    %63 = vector.extract_strided_slice %61 {offsets = [0, 0], sizes = [8, 64], strides = [1, 1]} : vector<8x96xf32> to vector<8x64xf32>
    %64 = arith.addf %62, %63 : vector<8x64xf32>
    %65 = arith.negf %64 : vector<8x64xf32>
    %66 = math.exp %65 : vector<8x64xf32>
    %cst_19 = arith.constant 1.000000e+00 : f32
    %67 = vector.broadcast %cst_19 : f32 to vector<8x64xf32>
    %68 = arith.addf %67, %66 : vector<8x64xf32>
    %69 = arith.divf %67, %68 : vector<8x64xf32>
    %70 = vector.extract_strided_slice %69 {offsets = [0, 0], sizes = [8, 32], strides = [1, 1]} : vector<8x64xf32> to vector<8x32xf32>
    %71 = vector.extract_strided_slice %69 {offsets = [0, 32], sizes = [8, 32], strides = [1, 1]} : vector<8x64xf32> to vector<8x32xf32>
    %72 = vector.extract_strided_slice %59 {offsets = [0, 64], sizes = [8, 32], strides = [1, 1]} : vector<8x96xf32> to vector<8x32xf32>
    %73 = vector.extract_strided_slice %61 {offsets = [0, 64], sizes = [8, 32], strides = [1, 1]} : vector<8x96xf32> to vector<8x32xf32>
    %74 = arith.mulf %70, %73 : vector<8x32xf32>
    %75 = arith.addf %72, %74 : vector<8x32xf32>
    %76 = math.tanh %75 : vector<8x32xf32>
    %cst_20 = arith.constant 1.000000e+00 : f32
    %77 = vector.broadcast %cst_20 : f32 to vector<8x32xf32>
    %78 = arith.subf %77, %71 : vector<8x32xf32>
    %79 = arith.mulf %78, %76 : vector<8x32xf32>
    %80 = arith.mulf %71, %57 : vector<8x32xf32>
    %81 = arith.addf %79, %80 : vector<8x32xf32>
    %c16 = arith.constant 16 : index
    %c0_21 = arith.constant 0 : index
    %82 = vector.load %arg10[%c16, %c0_21] : memref<64x32xf32, #tpu.memory_space<vmem>>, vector<8x32xf32>
    tpu.vector_store %arg10[%c16, %c0_21], %81 {strides = array<i32>} : memref<64x32xf32, #tpu.memory_space<vmem>>, vector<8x32xf32>,
    %83 = vector.extract_strided_slice %5 {offsets = [24, 0], sizes = [8, 96], strides = [1, 1]} : vector<64x96xf32> to vector<8x96xf32>
    %cst_22 = arith.constant dense<0.000000e+00> : vector<8x96xf32>
    %84 = tpu.matmul %81, %6, %cst_22 {dimension_numbers = #tpu.dot_dimension_numbers<[1], [0], [0], [1], [0, 0, 1, 1], [], []>} : vector<8x32xf32>, vector<32x96xf32>, vector<8x96xf32> -> vector<8x96xf32>
    %85 = arith.addf %84, %9 : vector<8x96xf32>
    %86 = vector.extract_strided_slice %83 {offsets = [0, 0], sizes = [8, 64], strides = [1, 1]} : vector<8x96xf32> to vector<8x64xf32>
    %87 = vector.extract_strided_slice %85 {offsets = [0, 0], sizes = [8, 64], strides = [1, 1]} : vector<8x96xf32> to vector<8x64xf32>
    %88 = arith.addf %86, %87 : vector<8x64xf32>
    %89 = arith.negf %88 : vector<8x64xf32>
    %90 = math.exp %89 : vector<8x64xf32>
    %cst_23 = arith.constant 1.000000e+00 : f32
    %91 = vector.broadcast %cst_23 : f32 to vector<8x64xf32>
    %92 = arith.addf %91, %90 : vector<8x64xf32>
    %93 = arith.divf %91, %92 : vector<8x64xf32>
    %94 = vector.extract_strided_slice %93 {offsets = [0, 0], sizes = [8, 32], strides = [1, 1]} : vector<8x64xf32> to vector<8x32xf32>
    %95 = vector.extract_strided_slice %93 {offsets = [0, 32], sizes = [8, 32], strides = [1, 1]} : vector<8x64xf32> to vector<8x32xf32>
    %96 = vector.extract_strided_slice %83 {offsets = [0, 64], sizes = [8, 32], strides = [1, 1]} : vector<8x96xf32> to vector<8x32xf32>
    %97 = vector.extract_strided_slice %85 {offsets = [0, 64], sizes = [8, 32], strides = [1, 1]} : vector<8x96xf32> to vector<8x32xf32>
    %98 = arith.mulf %94, %97 : vector<8x32xf32>
    %99 = arith.addf %96, %98 : vector<8x32xf32>
    %100 = math.tanh %99 : vector<8x32xf32>
    %cst_24 = arith.constant 1.000000e+00 : f32
    %101 = vector.broadcast %cst_24 : f32 to vector<8x32xf32>
    %102 = arith.subf %101, %95 : vector<8x32xf32>
    %103 = arith.mulf %102, %100 : vector<8x32xf32>
    %104 = arith.mulf %95, %81 : vector<8x32xf32>
    %105 = arith.addf %103, %104 : vector<8x32xf32>
    %c24 = arith.constant 24 : index
    %c0_25 = arith.constant 0 : index
    %106 = vector.load %arg10[%c24, %c0_25] : memref<64x32xf32, #tpu.memory_space<vmem>>, vector<8x32xf32>
    tpu.vector_store %arg10[%c24, %c0_25], %105 {strides = array<i32>} : memref<64x32xf32, #tpu.memory_space<vmem>>, vector<8x32xf32>,
    %107 = vector.extract_strided_slice %5 {offsets = [32, 0], sizes = [8, 96], strides = [1, 1]} : vector<64x96xf32> to vector<8x96xf32>
    %cst_26 = arith.constant dense<0.000000e+00> : vector<8x96xf32>
    %108 = tpu.matmul %105, %6, %cst_26 {dimension_numbers = #tpu.dot_dimension_numbers<[1], [0], [0], [1], [0, 0, 1, 1], [], []>} : vector<8x32xf32>, vector<32x96xf32>, vector<8x96xf32> -> vector<8x96xf32>
    %109 = arith.addf %108, %9 : vector<8x96xf32>
    %110 = vector.extract_strided_slice %107 {offsets = [0, 0], sizes = [8, 64], strides = [1, 1]} : vector<8x96xf32> to vector<8x64xf32>
    %111 = vector.extract_strided_slice %109 {offsets = [0, 0], sizes = [8, 64], strides = [1, 1]} : vector<8x96xf32> to vector<8x64xf32>
    %112 = arith.addf %110, %111 : vector<8x64xf32>
    %113 = arith.negf %112 : vector<8x64xf32>
    %114 = math.exp %113 : vector<8x64xf32>
    %cst_27 = arith.constant 1.000000e+00 : f32
    %115 = vector.broadcast %cst_27 : f32 to vector<8x64xf32>
    %116 = arith.addf %115, %114 : vector<8x64xf32>
    %117 = arith.divf %115, %116 : vector<8x64xf32>
    %118 = vector.extract_strided_slice %117 {offsets = [0, 0], sizes = [8, 32], strides = [1, 1]} : vector<8x64xf32> to vector<8x32xf32>
    %119 = vector.extract_strided_slice %117 {offsets = [0, 32], sizes = [8, 32], strides = [1, 1]} : vector<8x64xf32> to vector<8x32xf32>
    %120 = vector.extract_strided_slice %107 {offsets = [0, 64], sizes = [8, 32], strides = [1, 1]} : vector<8x96xf32> to vector<8x32xf32>
    %121 = vector.extract_strided_slice %109 {offsets = [0, 64], sizes = [8, 32], strides = [1, 1]} : vector<8x96xf32> to vector<8x32xf32>
    %122 = arith.mulf %118, %121 : vector<8x32xf32>
    %123 = arith.addf %120, %122 : vector<8x32xf32>
    %124 = math.tanh %123 : vector<8x32xf32>
    %cst_28 = arith.constant 1.000000e+00 : f32
    %125 = vector.broadcast %cst_28 : f32 to vector<8x32xf32>
    %126 = arith.subf %125, %119 : vector<8x32xf32>
    %127 = arith.mulf %126, %124 : vector<8x32xf32>
    %128 = arith.mulf %119, %105 : vector<8x32xf32>
    %129 = arith.addf %127, %128 : vector<8x32xf32>
    %c32 = arith.constant 32 : index
    %c0_29 = arith.constant 0 : index
    %130 = vector.load %arg10[%c32, %c0_29] : memref<64x32xf32, #tpu.memory_space<vmem>>, vector<8x32xf32>
    tpu.vector_store %arg10[%c32, %c0_29], %129 {strides = array<i32>} : memref<64x32xf32, #tpu.memory_space<vmem>>, vector<8x32xf32>,
    %131 = vector.extract_strided_slice %5 {offsets = [40, 0], sizes = [8, 96], strides = [1, 1]} : vector<64x96xf32> to vector<8x96xf32>
    %cst_30 = arith.constant dense<0.000000e+00> : vector<8x96xf32>
    %132 = tpu.matmul %129, %6, %cst_30 {dimension_numbers = #tpu.dot_dimension_numbers<[1], [0], [0], [1], [0, 0, 1, 1], [], []>} : vector<8x32xf32>, vector<32x96xf32>, vector<8x96xf32> -> vector<8x96xf32>
    %133 = arith.addf %132, %9 : vector<8x96xf32>
    %134 = vector.extract_strided_slice %131 {offsets = [0, 0], sizes = [8, 64], strides = [1, 1]} : vector<8x96xf32> to vector<8x64xf32>
    %135 = vector.extract_strided_slice %133 {offsets = [0, 0], sizes = [8, 64], strides = [1, 1]} : vector<8x96xf32> to vector<8x64xf32>
    %136 = arith.addf %134, %135 : vector<8x64xf32>
    %137 = arith.negf %136 : vector<8x64xf32>
    %138 = math.exp %137 : vector<8x64xf32>
    %cst_31 = arith.constant 1.000000e+00 : f32
    %139 = vector.broadcast %cst_31 : f32 to vector<8x64xf32>
    %140 = arith.addf %139, %138 : vector<8x64xf32>
    %141 = arith.divf %139, %140 : vector<8x64xf32>
    %142 = vector.extract_strided_slice %141 {offsets = [0, 0], sizes = [8, 32], strides = [1, 1]} : vector<8x64xf32> to vector<8x32xf32>
    %143 = vector.extract_strided_slice %141 {offsets = [0, 32], sizes = [8, 32], strides = [1, 1]} : vector<8x64xf32> to vector<8x32xf32>
    %144 = vector.extract_strided_slice %131 {offsets = [0, 64], sizes = [8, 32], strides = [1, 1]} : vector<8x96xf32> to vector<8x32xf32>
    %145 = vector.extract_strided_slice %133 {offsets = [0, 64], sizes = [8, 32], strides = [1, 1]} : vector<8x96xf32> to vector<8x32xf32>
    %146 = arith.mulf %142, %145 : vector<8x32xf32>
    %147 = arith.addf %144, %146 : vector<8x32xf32>
    %148 = math.tanh %147 : vector<8x32xf32>
    %cst_32 = arith.constant 1.000000e+00 : f32
    %149 = vector.broadcast %cst_32 : f32 to vector<8x32xf32>
    %150 = arith.subf %149, %143 : vector<8x32xf32>
    %151 = arith.mulf %150, %148 : vector<8x32xf32>
    %152 = arith.mulf %143, %129 : vector<8x32xf32>
    %153 = arith.addf %151, %152 : vector<8x32xf32>
    %c40 = arith.constant 40 : index
    %c0_33 = arith.constant 0 : index
    %154 = vector.load %arg10[%c40, %c0_33] : memref<64x32xf32, #tpu.memory_space<vmem>>, vector<8x32xf32>
    tpu.vector_store %arg10[%c40, %c0_33], %153 {strides = array<i32>} : memref<64x32xf32, #tpu.memory_space<vmem>>, vector<8x32xf32>,
    %155 = vector.extract_strided_slice %5 {offsets = [48, 0], sizes = [8, 96], strides = [1, 1]} : vector<64x96xf32> to vector<8x96xf32>
    %cst_34 = arith.constant dense<0.000000e+00> : vector<8x96xf32>
    %156 = tpu.matmul %153, %6, %cst_34 {dimension_numbers = #tpu.dot_dimension_numbers<[1], [0], [0], [1], [0, 0, 1, 1], [], []>} : vector<8x32xf32>, vector<32x96xf32>, vector<8x96xf32> -> vector<8x96xf32>
    %157 = arith.addf %156, %9 : vector<8x96xf32>
    %158 = vector.extract_strided_slice %155 {offsets = [0, 0], sizes = [8, 64], strides = [1, 1]} : vector<8x96xf32> to vector<8x64xf32>
    %159 = vector.extract_strided_slice %157 {offsets = [0, 0], sizes = [8, 64], strides = [1, 1]} : vector<8x96xf32> to vector<8x64xf32>
    %160 = arith.addf %158, %159 : vector<8x64xf32>
    %161 = arith.negf %160 : vector<8x64xf32>
    %162 = math.exp %161 : vector<8x64xf32>
    %cst_35 = arith.constant 1.000000e+00 : f32
    %163 = vector.broadcast %cst_35 : f32 to vector<8x64xf32>
    %164 = arith.addf %163, %162 : vector<8x64xf32>
    %165 = arith.divf %163, %164 : vector<8x64xf32>
    %166 = vector.extract_strided_slice %165 {offsets = [0, 0], sizes = [8, 32], strides = [1, 1]} : vector<8x64xf32> to vector<8x32xf32>
    %167 = vector.extract_strided_slice %165 {offsets = [0, 32], sizes = [8, 32], strides = [1, 1]} : vector<8x64xf32> to vector<8x32xf32>
    %168 = vector.extract_strided_slice %155 {offsets = [0, 64], sizes = [8, 32], strides = [1, 1]} : vector<8x96xf32> to vector<8x32xf32>
    %169 = vector.extract_strided_slice %157 {offsets = [0, 64], sizes = [8, 32], strides = [1, 1]} : vector<8x96xf32> to vector<8x32xf32>
    %170 = arith.mulf %166, %169 : vector<8x32xf32>
    %171 = arith.addf %168, %170 : vector<8x32xf32>
    %172 = math.tanh %171 : vector<8x32xf32>
    %cst_36 = arith.constant 1.000000e+00 : f32
    %173 = vector.broadcast %cst_36 : f32 to vector<8x32xf32>
    %174 = arith.subf %173, %167 : vector<8x32xf32>
    %175 = arith.mulf %174, %172 : vector<8x32xf32>
    %176 = arith.mulf %167, %153 : vector<8x32xf32>
    %177 = arith.addf %175, %176 : vector<8x32xf32>
    %c48 = arith.constant 48 : index
    %c0_37 = arith.constant 0 : index
    %178 = vector.load %arg10[%c48, %c0_37] : memref<64x32xf32, #tpu.memory_space<vmem>>, vector<8x32xf32>
    tpu.vector_store %arg10[%c48, %c0_37], %177 {strides = array<i32>} : memref<64x32xf32, #tpu.memory_space<vmem>>, vector<8x32xf32>,
    %179 = vector.extract_strided_slice %5 {offsets = [56, 0], sizes = [8, 96], strides = [1, 1]} : vector<64x96xf32> to vector<8x96xf32>
    %cst_38 = arith.constant dense<0.000000e+00> : vector<8x96xf32>
    %180 = tpu.matmul %177, %6, %cst_38 {dimension_numbers = #tpu.dot_dimension_numbers<[1], [0], [0], [1], [0, 0, 1, 1], [], []>} : vector<8x32xf32>, vector<32x96xf32>, vector<8x96xf32> -> vector<8x96xf32>
    %181 = arith.addf %180, %9 : vector<8x96xf32>
    %182 = vector.extract_strided_slice %179 {offsets = [0, 0], sizes = [8, 64], strides = [1, 1]} : vector<8x96xf32> to vector<8x64xf32>
    %183 = vector.extract_strided_slice %181 {offsets = [0, 0], sizes = [8, 64], strides = [1, 1]} : vector<8x96xf32> to vector<8x64xf32>
    %184 = arith.addf %182, %183 : vector<8x64xf32>
    %185 = arith.negf %184 : vector<8x64xf32>
    %186 = math.exp %185 : vector<8x64xf32>
    %cst_39 = arith.constant 1.000000e+00 : f32
    %187 = vector.broadcast %cst_39 : f32 to vector<8x64xf32>
    %188 = arith.addf %187, %186 : vector<8x64xf32>
    %189 = arith.divf %187, %188 : vector<8x64xf32>
    %190 = vector.extract_strided_slice %189 {offsets = [0, 0], sizes = [8, 32], strides = [1, 1]} : vector<8x64xf32> to vector<8x32xf32>
    %191 = vector.extract_strided_slice %189 {offsets = [0, 32], sizes = [8, 32], strides = [1, 1]} : vector<8x64xf32> to vector<8x32xf32>
    %192 = vector.extract_strided_slice %179 {offsets = [0, 64], sizes = [8, 32], strides = [1, 1]} : vector<8x96xf32> to vector<8x32xf32>
    %193 = vector.extract_strided_slice %181 {offsets = [0, 64], sizes = [8, 32], strides = [1, 1]} : vector<8x96xf32> to vector<8x32xf32>
    %194 = arith.mulf %190, %193 : vector<8x32xf32>
    %195 = arith.addf %192, %194 : vector<8x32xf32>
    %196 = math.tanh %195 : vector<8x32xf32>
    %cst_40 = arith.constant 1.000000e+00 : f32
    %197 = vector.broadcast %cst_40 : f32 to vector<8x32xf32>
    %198 = arith.subf %197, %191 : vector<8x32xf32>
    %199 = arith.mulf %198, %196 : vector<8x32xf32>
    %200 = arith.mulf %191, %177 : vector<8x32xf32>
    %201 = arith.addf %199, %200 : vector<8x32xf32>
    %c56 = arith.constant 56 : index
    %c0_41 = arith.constant 0 : index
    %202 = vector.load %arg10[%c56, %c0_41] : memref<64x32xf32, #tpu.memory_space<vmem>>, vector<8x32xf32>
    tpu.vector_store %arg10[%c56, %c0_41], %201 {strides = array<i32>} : memref<64x32xf32, #tpu.memory_space<vmem>>, vector<8x32xf32>,
    %c0_42 = arith.constant 0 : index
    %c0_43 = arith.constant 0 : index
    %203 = vector.load %arg10[%c0_42, %c0_43] : memref<64x32xf32, #tpu.memory_space<vmem>>, vector<64x32xf32>
    %c0_44 = arith.constant 0 : index
    %c0_45 = arith.constant 0 : index
    %204 = vector.load %arg4[%c0_44, %c0_45] : memref<32x96xf32, #tpu.memory_space<vmem>>, vector<32x96xf32>
    %cst_46 = arith.constant dense<0.000000e+00> : vector<64x96xf32>
    %205 = tpu.matmul %203, %204, %cst_46 {dimension_numbers = #tpu.dot_dimension_numbers<[1], [0], [0], [1], [0, 0, 1, 1], [], []>} : vector<64x32xf32>, vector<32x96xf32>, vector<64x96xf32> -> vector<64x96xf32>
    %c0_47 = arith.constant 0 : index
    %c0_48 = arith.constant 0 : index
    %206 = vector.load %arg6[%c0_47, %c0_48] : memref<2x96xf32, #tpu.memory_space<vmem>>, vector<1x96xf32>
    %207 = vector.broadcast %206 : vector<1x96xf32> to vector<64x96xf32>
    %208 = arith.addf %205, %207 : vector<64x96xf32>
    %c0_49 = arith.constant 0 : index
    %c0_50 = arith.constant 0 : index
    %209 = vector.load %arg5[%c0_49, %c0_50] : memref<32x96xf32, #tpu.memory_space<vmem>>, vector<32x96xf32>
    %c1_51 = arith.constant 1 : index
    %c0_52 = arith.constant 0 : index
    %210 = vector.load %arg6[%c1_51, %c0_52] : memref<2x96xf32, #tpu.memory_space<vmem>>, vector<1x96xf32>
    %211 = vector.shape_cast %210 : vector<1x96xf32> to vector<1x96xf32>
    %212 = vector.broadcast %211 : vector<1x96xf32> to vector<8x96xf32>
    %cst_53 = arith.constant 0.000000e+00 : f32
    %213 = vector.broadcast %cst_53 : f32 to vector<8x32xf32>
    %214 = vector.extract_strided_slice %208 {offsets = [0, 0], sizes = [8, 96], strides = [1, 1]} : vector<64x96xf32> to vector<8x96xf32>
    %cst_54 = arith.constant dense<0.000000e+00> : vector<8x96xf32>
    %215 = tpu.matmul %213, %209, %cst_54 {dimension_numbers = #tpu.dot_dimension_numbers<[1], [0], [0], [1], [0, 0, 1, 1], [], []>} : vector<8x32xf32>, vector<32x96xf32>, vector<8x96xf32> -> vector<8x96xf32>
    %216 = arith.addf %215, %212 : vector<8x96xf32>
    %217 = vector.extract_strided_slice %214 {offsets = [0, 0], sizes = [8, 64], strides = [1, 1]} : vector<8x96xf32> to vector<8x64xf32>
    %218 = vector.extract_strided_slice %216 {offsets = [0, 0], sizes = [8, 64], strides = [1, 1]} : vector<8x96xf32> to vector<8x64xf32>
    %219 = arith.addf %217, %218 : vector<8x64xf32>
    %220 = arith.negf %219 : vector<8x64xf32>
    %221 = math.exp %220 : vector<8x64xf32>
    %cst_55 = arith.constant 1.000000e+00 : f32
    %222 = vector.broadcast %cst_55 : f32 to vector<8x64xf32>
    %223 = arith.addf %222, %221 : vector<8x64xf32>
    %224 = arith.divf %222, %223 : vector<8x64xf32>
    %225 = vector.extract_strided_slice %224 {offsets = [0, 0], sizes = [8, 32], strides = [1, 1]} : vector<8x64xf32> to vector<8x32xf32>
    %226 = vector.extract_strided_slice %224 {offsets = [0, 32], sizes = [8, 32], strides = [1, 1]} : vector<8x64xf32> to vector<8x32xf32>
    %227 = vector.extract_strided_slice %214 {offsets = [0, 64], sizes = [8, 32], strides = [1, 1]} : vector<8x96xf32> to vector<8x32xf32>
    %228 = vector.extract_strided_slice %216 {offsets = [0, 64], sizes = [8, 32], strides = [1, 1]} : vector<8x96xf32> to vector<8x32xf32>
    %229 = arith.mulf %225, %228 : vector<8x32xf32>
    %230 = arith.addf %227, %229 : vector<8x32xf32>
    %231 = math.tanh %230 : vector<8x32xf32>
    %cst_56 = arith.constant 1.000000e+00 : f32
    %232 = vector.broadcast %cst_56 : f32 to vector<8x32xf32>
    %233 = arith.subf %232, %226 : vector<8x32xf32>
    %234 = arith.mulf %233, %231 : vector<8x32xf32>
    %235 = arith.mulf %226, %213 : vector<8x32xf32>
    %236 = arith.addf %234, %235 : vector<8x32xf32>
    %c0_57 = arith.constant 0 : index
    %c0_58 = arith.constant 0 : index
    %237 = vector.load %arg10[%c0_57, %c0_58] : memref<64x32xf32, #tpu.memory_space<vmem>>, vector<8x32xf32>
    tpu.vector_store %arg10[%c0_57, %c0_58], %236 {strides = array<i32>} : memref<64x32xf32, #tpu.memory_space<vmem>>, vector<8x32xf32>,
    %238 = vector.extract_strided_slice %208 {offsets = [8, 0], sizes = [8, 96], strides = [1, 1]} : vector<64x96xf32> to vector<8x96xf32>
    %cst_59 = arith.constant dense<0.000000e+00> : vector<8x96xf32>
    %239 = tpu.matmul %236, %209, %cst_59 {dimension_numbers = #tpu.dot_dimension_numbers<[1], [0], [0], [1], [0, 0, 1, 1], [], []>} : vector<8x32xf32>, vector<32x96xf32>, vector<8x96xf32> -> vector<8x96xf32>
    %240 = arith.addf %239, %212 : vector<8x96xf32>
    %241 = vector.extract_strided_slice %238 {offsets = [0, 0], sizes = [8, 64], strides = [1, 1]} : vector<8x96xf32> to vector<8x64xf32>
    %242 = vector.extract_strided_slice %240 {offsets = [0, 0], sizes = [8, 64], strides = [1, 1]} : vector<8x96xf32> to vector<8x64xf32>
    %243 = arith.addf %241, %242 : vector<8x64xf32>
    %244 = arith.negf %243 : vector<8x64xf32>
    %245 = math.exp %244 : vector<8x64xf32>
    %cst_60 = arith.constant 1.000000e+00 : f32
    %246 = vector.broadcast %cst_60 : f32 to vector<8x64xf32>
    %247 = arith.addf %246, %245 : vector<8x64xf32>
    %248 = arith.divf %246, %247 : vector<8x64xf32>
    %249 = vector.extract_strided_slice %248 {offsets = [0, 0], sizes = [8, 32], strides = [1, 1]} : vector<8x64xf32> to vector<8x32xf32>
    %250 = vector.extract_strided_slice %248 {offsets = [0, 32], sizes = [8, 32], strides = [1, 1]} : vector<8x64xf32> to vector<8x32xf32>
    %251 = vector.extract_strided_slice %238 {offsets = [0, 64], sizes = [8, 32], strides = [1, 1]} : vector<8x96xf32> to vector<8x32xf32>
    %252 = vector.extract_strided_slice %240 {offsets = [0, 64], sizes = [8, 32], strides = [1, 1]} : vector<8x96xf32> to vector<8x32xf32>
    %253 = arith.mulf %249, %252 : vector<8x32xf32>
    %254 = arith.addf %251, %253 : vector<8x32xf32>
    %255 = math.tanh %254 : vector<8x32xf32>
    %cst_61 = arith.constant 1.000000e+00 : f32
    %256 = vector.broadcast %cst_61 : f32 to vector<8x32xf32>
    %257 = arith.subf %256, %250 : vector<8x32xf32>
    %258 = arith.mulf %257, %255 : vector<8x32xf32>
    %259 = arith.mulf %250, %236 : vector<8x32xf32>
    %260 = arith.addf %258, %259 : vector<8x32xf32>
    %c8_62 = arith.constant 8 : index
    %c0_63 = arith.constant 0 : index
    %261 = vector.load %arg10[%c8_62, %c0_63] : memref<64x32xf32, #tpu.memory_space<vmem>>, vector<8x32xf32>
    tpu.vector_store %arg10[%c8_62, %c0_63], %260 {strides = array<i32>} : memref<64x32xf32, #tpu.memory_space<vmem>>, vector<8x32xf32>,
    %262 = vector.extract_strided_slice %208 {offsets = [16, 0], sizes = [8, 96], strides = [1, 1]} : vector<64x96xf32> to vector<8x96xf32>
    %cst_64 = arith.constant dense<0.000000e+00> : vector<8x96xf32>
    %263 = tpu.matmul %260, %209, %cst_64 {dimension_numbers = #tpu.dot_dimension_numbers<[1], [0], [0], [1], [0, 0, 1, 1], [], []>} : vector<8x32xf32>, vector<32x96xf32>, vector<8x96xf32> -> vector<8x96xf32>
    %264 = arith.addf %263, %212 : vector<8x96xf32>
    %265 = vector.extract_strided_slice %262 {offsets = [0, 0], sizes = [8, 64], strides = [1, 1]} : vector<8x96xf32> to vector<8x64xf32>
    %266 = vector.extract_strided_slice %264 {offsets = [0, 0], sizes = [8, 64], strides = [1, 1]} : vector<8x96xf32> to vector<8x64xf32>
    %267 = arith.addf %265, %266 : vector<8x64xf32>
    %268 = arith.negf %267 : vector<8x64xf32>
    %269 = math.exp %268 : vector<8x64xf32>
    %cst_65 = arith.constant 1.000000e+00 : f32
    %270 = vector.broadcast %cst_65 : f32 to vector<8x64xf32>
    %271 = arith.addf %270, %269 : vector<8x64xf32>
    %272 = arith.divf %270, %271 : vector<8x64xf32>
    %273 = vector.extract_strided_slice %272 {offsets = [0, 0], sizes = [8, 32], strides = [1, 1]} : vector<8x64xf32> to vector<8x32xf32>
    %274 = vector.extract_strided_slice %272 {offsets = [0, 32], sizes = [8, 32], strides = [1, 1]} : vector<8x64xf32> to vector<8x32xf32>
    %275 = vector.extract_strided_slice %262 {offsets = [0, 64], sizes = [8, 32], strides = [1, 1]} : vector<8x96xf32> to vector<8x32xf32>
    %276 = vector.extract_strided_slice %264 {offsets = [0, 64], sizes = [8, 32], strides = [1, 1]} : vector<8x96xf32> to vector<8x32xf32>
    %277 = arith.mulf %273, %276 : vector<8x32xf32>
    %278 = arith.addf %275, %277 : vector<8x32xf32>
    %279 = math.tanh %278 : vector<8x32xf32>
    %cst_66 = arith.constant 1.000000e+00 : f32
    %280 = vector.broadcast %cst_66 : f32 to vector<8x32xf32>
    %281 = arith.subf %280, %274 : vector<8x32xf32>
    %282 = arith.mulf %281, %279 : vector<8x32xf32>
    %283 = arith.mulf %274, %260 : vector<8x32xf32>
    %284 = arith.addf %282, %283 : vector<8x32xf32>
    %c16_67 = arith.constant 16 : index
    %c0_68 = arith.constant 0 : index
    %285 = vector.load %arg10[%c16_67, %c0_68] : memref<64x32xf32, #tpu.memory_space<vmem>>, vector<8x32xf32>
    tpu.vector_store %arg10[%c16_67, %c0_68], %284 {strides = array<i32>} : memref<64x32xf32, #tpu.memory_space<vmem>>, vector<8x32xf32>,
    %286 = vector.extract_strided_slice %208 {offsets = [24, 0], sizes = [8, 96], strides = [1, 1]} : vector<64x96xf32> to vector<8x96xf32>
    %cst_69 = arith.constant dense<0.000000e+00> : vector<8x96xf32>
    %287 = tpu.matmul %284, %209, %cst_69 {dimension_numbers = #tpu.dot_dimension_numbers<[1], [0], [0], [1], [0, 0, 1, 1], [], []>} : vector<8x32xf32>, vector<32x96xf32>, vector<8x96xf32> -> vector<8x96xf32>
    %288 = arith.addf %287, %212 : vector<8x96xf32>
    %289 = vector.extract_strided_slice %286 {offsets = [0, 0], sizes = [8, 64], strides = [1, 1]} : vector<8x96xf32> to vector<8x64xf32>
    %290 = vector.extract_strided_slice %288 {offsets = [0, 0], sizes = [8, 64], strides = [1, 1]} : vector<8x96xf32> to vector<8x64xf32>
    %291 = arith.addf %289, %290 : vector<8x64xf32>
    %292 = arith.negf %291 : vector<8x64xf32>
    %293 = math.exp %292 : vector<8x64xf32>
    %cst_70 = arith.constant 1.000000e+00 : f32
    %294 = vector.broadcast %cst_70 : f32 to vector<8x64xf32>
    %295 = arith.addf %294, %293 : vector<8x64xf32>
    %296 = arith.divf %294, %295 : vector<8x64xf32>
    %297 = vector.extract_strided_slice %296 {offsets = [0, 0], sizes = [8, 32], strides = [1, 1]} : vector<8x64xf32> to vector<8x32xf32>
    %298 = vector.extract_strided_slice %296 {offsets = [0, 32], sizes = [8, 32], strides = [1, 1]} : vector<8x64xf32> to vector<8x32xf32>
    %299 = vector.extract_strided_slice %286 {offsets = [0, 64], sizes = [8, 32], strides = [1, 1]} : vector<8x96xf32> to vector<8x32xf32>
    %300 = vector.extract_strided_slice %288 {offsets = [0, 64], sizes = [8, 32], strides = [1, 1]} : vector<8x96xf32> to vector<8x32xf32>
    %301 = arith.mulf %297, %300 : vector<8x32xf32>
    %302 = arith.addf %299, %301 : vector<8x32xf32>
    %303 = math.tanh %302 : vector<8x32xf32>
    %cst_71 = arith.constant 1.000000e+00 : f32
    %304 = vector.broadcast %cst_71 : f32 to vector<8x32xf32>
    %305 = arith.subf %304, %298 : vector<8x32xf32>
    %306 = arith.mulf %305, %303 : vector<8x32xf32>
    %307 = arith.mulf %298, %284 : vector<8x32xf32>
    %308 = arith.addf %306, %307 : vector<8x32xf32>
    %c24_72 = arith.constant 24 : index
    %c0_73 = arith.constant 0 : index
    %309 = vector.load %arg10[%c24_72, %c0_73] : memref<64x32xf32, #tpu.memory_space<vmem>>, vector<8x32xf32>
    tpu.vector_store %arg10[%c24_72, %c0_73], %308 {strides = array<i32>} : memref<64x32xf32, #tpu.memory_space<vmem>>, vector<8x32xf32>,
    %310 = vector.extract_strided_slice %208 {offsets = [32, 0], sizes = [8, 96], strides = [1, 1]} : vector<64x96xf32> to vector<8x96xf32>
    %cst_74 = arith.constant dense<0.000000e+00> : vector<8x96xf32>
    %311 = tpu.matmul %308, %209, %cst_74 {dimension_numbers = #tpu.dot_dimension_numbers<[1], [0], [0], [1], [0, 0, 1, 1], [], []>} : vector<8x32xf32>, vector<32x96xf32>, vector<8x96xf32> -> vector<8x96xf32>
    %312 = arith.addf %311, %212 : vector<8x96xf32>
    %313 = vector.extract_strided_slice %310 {offsets = [0, 0], sizes = [8, 64], strides = [1, 1]} : vector<8x96xf32> to vector<8x64xf32>
    %314 = vector.extract_strided_slice %312 {offsets = [0, 0], sizes = [8, 64], strides = [1, 1]} : vector<8x96xf32> to vector<8x64xf32>
    %315 = arith.addf %313, %314 : vector<8x64xf32>
    %316 = arith.negf %315 : vector<8x64xf32>
    %317 = math.exp %316 : vector<8x64xf32>
    %cst_75 = arith.constant 1.000000e+00 : f32
    %318 = vector.broadcast %cst_75 : f32 to vector<8x64xf32>
    %319 = arith.addf %318, %317 : vector<8x64xf32>
    %320 = arith.divf %318, %319 : vector<8x64xf32>
    %321 = vector.extract_strided_slice %320 {offsets = [0, 0], sizes = [8, 32], strides = [1, 1]} : vector<8x64xf32> to vector<8x32xf32>
    %322 = vector.extract_strided_slice %320 {offsets = [0, 32], sizes = [8, 32], strides = [1, 1]} : vector<8x64xf32> to vector<8x32xf32>
    %323 = vector.extract_strided_slice %310 {offsets = [0, 64], sizes = [8, 32], strides = [1, 1]} : vector<8x96xf32> to vector<8x32xf32>
    %324 = vector.extract_strided_slice %312 {offsets = [0, 64], sizes = [8, 32], strides = [1, 1]} : vector<8x96xf32> to vector<8x32xf32>
    %325 = arith.mulf %321, %324 : vector<8x32xf32>
    %326 = arith.addf %323, %325 : vector<8x32xf32>
    %327 = math.tanh %326 : vector<8x32xf32>
    %cst_76 = arith.constant 1.000000e+00 : f32
    %328 = vector.broadcast %cst_76 : f32 to vector<8x32xf32>
    %329 = arith.subf %328, %322 : vector<8x32xf32>
    %330 = arith.mulf %329, %327 : vector<8x32xf32>
    %331 = arith.mulf %322, %308 : vector<8x32xf32>
    %332 = arith.addf %330, %331 : vector<8x32xf32>
    %c32_77 = arith.constant 32 : index
    %c0_78 = arith.constant 0 : index
    %333 = vector.load %arg10[%c32_77, %c0_78] : memref<64x32xf32, #tpu.memory_space<vmem>>, vector<8x32xf32>
    tpu.vector_store %arg10[%c32_77, %c0_78], %332 {strides = array<i32>} : memref<64x32xf32, #tpu.memory_space<vmem>>, vector<8x32xf32>,
    %334 = vector.extract_strided_slice %208 {offsets = [40, 0], sizes = [8, 96], strides = [1, 1]} : vector<64x96xf32> to vector<8x96xf32>
    %cst_79 = arith.constant dense<0.000000e+00> : vector<8x96xf32>
    %335 = tpu.matmul %332, %209, %cst_79 {dimension_numbers = #tpu.dot_dimension_numbers<[1], [0], [0], [1], [0, 0, 1, 1], [], []>} : vector<8x32xf32>, vector<32x96xf32>, vector<8x96xf32> -> vector<8x96xf32>
    %336 = arith.addf %335, %212 : vector<8x96xf32>
    %337 = vector.extract_strided_slice %334 {offsets = [0, 0], sizes = [8, 64], strides = [1, 1]} : vector<8x96xf32> to vector<8x64xf32>
    %338 = vector.extract_strided_slice %336 {offsets = [0, 0], sizes = [8, 64], strides = [1, 1]} : vector<8x96xf32> to vector<8x64xf32>
    %339 = arith.addf %337, %338 : vector<8x64xf32>
    %340 = arith.negf %339 : vector<8x64xf32>
    %341 = math.exp %340 : vector<8x64xf32>
    %cst_80 = arith.constant 1.000000e+00 : f32
    %342 = vector.broadcast %cst_80 : f32 to vector<8x64xf32>
    %343 = arith.addf %342, %341 : vector<8x64xf32>
    %344 = arith.divf %342, %343 : vector<8x64xf32>
    %345 = vector.extract_strided_slice %344 {offsets = [0, 0], sizes = [8, 32], strides = [1, 1]} : vector<8x64xf32> to vector<8x32xf32>
    %346 = vector.extract_strided_slice %344 {offsets = [0, 32], sizes = [8, 32], strides = [1, 1]} : vector<8x64xf32> to vector<8x32xf32>
    %347 = vector.extract_strided_slice %334 {offsets = [0, 64], sizes = [8, 32], strides = [1, 1]} : vector<8x96xf32> to vector<8x32xf32>
    %348 = vector.extract_strided_slice %336 {offsets = [0, 64], sizes = [8, 32], strides = [1, 1]} : vector<8x96xf32> to vector<8x32xf32>
    %349 = arith.mulf %345, %348 : vector<8x32xf32>
    %350 = arith.addf %347, %349 : vector<8x32xf32>
    %351 = math.tanh %350 : vector<8x32xf32>
    %cst_81 = arith.constant 1.000000e+00 : f32
    %352 = vector.broadcast %cst_81 : f32 to vector<8x32xf32>
    %353 = arith.subf %352, %346 : vector<8x32xf32>
    %354 = arith.mulf %353, %351 : vector<8x32xf32>
    %355 = arith.mulf %346, %332 : vector<8x32xf32>
    %356 = arith.addf %354, %355 : vector<8x32xf32>
    %c40_82 = arith.constant 40 : index
    %c0_83 = arith.constant 0 : index
    %357 = vector.load %arg10[%c40_82, %c0_83] : memref<64x32xf32, #tpu.memory_space<vmem>>, vector<8x32xf32>
    tpu.vector_store %arg10[%c40_82, %c0_83], %356 {strides = array<i32>} : memref<64x32xf32, #tpu.memory_space<vmem>>, vector<8x32xf32>,
    %358 = vector.extract_strided_slice %208 {offsets = [48, 0], sizes = [8, 96], strides = [1, 1]} : vector<64x96xf32> to vector<8x96xf32>
    %cst_84 = arith.constant dense<0.000000e+00> : vector<8x96xf32>
    %359 = tpu.matmul %356, %209, %cst_84 {dimension_numbers = #tpu.dot_dimension_numbers<[1], [0], [0], [1], [0, 0, 1, 1], [], []>} : vector<8x32xf32>, vector<32x96xf32>, vector<8x96xf32> -> vector<8x96xf32>
    %360 = arith.addf %359, %212 : vector<8x96xf32>
    %361 = vector.extract_strided_slice %358 {offsets = [0, 0], sizes = [8, 64], strides = [1, 1]} : vector<8x96xf32> to vector<8x64xf32>
    %362 = vector.extract_strided_slice %360 {offsets = [0, 0], sizes = [8, 64], strides = [1, 1]} : vector<8x96xf32> to vector<8x64xf32>
    %363 = arith.addf %361, %362 : vector<8x64xf32>
    %364 = arith.negf %363 : vector<8x64xf32>
    %365 = math.exp %364 : vector<8x64xf32>
    %cst_85 = arith.constant 1.000000e+00 : f32
    %366 = vector.broadcast %cst_85 : f32 to vector<8x64xf32>
    %367 = arith.addf %366, %365 : vector<8x64xf32>
    %368 = arith.divf %366, %367 : vector<8x64xf32>
    %369 = vector.extract_strided_slice %368 {offsets = [0, 0], sizes = [8, 32], strides = [1, 1]} : vector<8x64xf32> to vector<8x32xf32>
    %370 = vector.extract_strided_slice %368 {offsets = [0, 32], sizes = [8, 32], strides = [1, 1]} : vector<8x64xf32> to vector<8x32xf32>
    %371 = vector.extract_strided_slice %358 {offsets = [0, 64], sizes = [8, 32], strides = [1, 1]} : vector<8x96xf32> to vector<8x32xf32>
    %372 = vector.extract_strided_slice %360 {offsets = [0, 64], sizes = [8, 32], strides = [1, 1]} : vector<8x96xf32> to vector<8x32xf32>
    %373 = arith.mulf %369, %372 : vector<8x32xf32>
    %374 = arith.addf %371, %373 : vector<8x32xf32>
    %375 = math.tanh %374 : vector<8x32xf32>
    %cst_86 = arith.constant 1.000000e+00 : f32
    %376 = vector.broadcast %cst_86 : f32 to vector<8x32xf32>
    %377 = arith.subf %376, %370 : vector<8x32xf32>
    %378 = arith.mulf %377, %375 : vector<8x32xf32>
    %379 = arith.mulf %370, %356 : vector<8x32xf32>
    %380 = arith.addf %378, %379 : vector<8x32xf32>
    %c48_87 = arith.constant 48 : index
    %c0_88 = arith.constant 0 : index
    %381 = vector.load %arg10[%c48_87, %c0_88] : memref<64x32xf32, #tpu.memory_space<vmem>>, vector<8x32xf32>
    tpu.vector_store %arg10[%c48_87, %c0_88], %380 {strides = array<i32>} : memref<64x32xf32, #tpu.memory_space<vmem>>, vector<8x32xf32>,
    %382 = vector.extract_strided_slice %208 {offsets = [56, 0], sizes = [8, 96], strides = [1, 1]} : vector<64x96xf32> to vector<8x96xf32>
    %cst_89 = arith.constant dense<0.000000e+00> : vector<8x96xf32>
    %383 = tpu.matmul %380, %209, %cst_89 {dimension_numbers = #tpu.dot_dimension_numbers<[1], [0], [0], [1], [0, 0, 1, 1], [], []>} : vector<8x32xf32>, vector<32x96xf32>, vector<8x96xf32> -> vector<8x96xf32>
    %384 = arith.addf %383, %212 : vector<8x96xf32>
    %385 = vector.extract_strided_slice %382 {offsets = [0, 0], sizes = [8, 64], strides = [1, 1]} : vector<8x96xf32> to vector<8x64xf32>
    %386 = vector.extract_strided_slice %384 {offsets = [0, 0], sizes = [8, 64], strides = [1, 1]} : vector<8x96xf32> to vector<8x64xf32>
    %387 = arith.addf %385, %386 : vector<8x64xf32>
    %388 = arith.negf %387 : vector<8x64xf32>
    %389 = math.exp %388 : vector<8x64xf32>
    %cst_90 = arith.constant 1.000000e+00 : f32
    %390 = vector.broadcast %cst_90 : f32 to vector<8x64xf32>
    %391 = arith.addf %390, %389 : vector<8x64xf32>
    %392 = arith.divf %390, %391 : vector<8x64xf32>
    %393 = vector.extract_strided_slice %392 {offsets = [0, 0], sizes = [8, 32], strides = [1, 1]} : vector<8x64xf32> to vector<8x32xf32>
    %394 = vector.extract_strided_slice %392 {offsets = [0, 32], sizes = [8, 32], strides = [1, 1]} : vector<8x64xf32> to vector<8x32xf32>
    %395 = vector.extract_strided_slice %382 {offsets = [0, 64], sizes = [8, 32], strides = [1, 1]} : vector<8x96xf32> to vector<8x32xf32>
    %396 = vector.extract_strided_slice %384 {offsets = [0, 64], sizes = [8, 32], strides = [1, 1]} : vector<8x96xf32> to vector<8x32xf32>
    %397 = arith.mulf %393, %396 : vector<8x32xf32>
    %398 = arith.addf %395, %397 : vector<8x32xf32>
    %399 = math.tanh %398 : vector<8x32xf32>
    %cst_91 = arith.constant 1.000000e+00 : f32
    %400 = vector.broadcast %cst_91 : f32 to vector<8x32xf32>
    %401 = arith.subf %400, %394 : vector<8x32xf32>
    %402 = arith.mulf %401, %399 : vector<8x32xf32>
    %403 = arith.mulf %394, %380 : vector<8x32xf32>
    %404 = arith.addf %402, %403 : vector<8x32xf32>
    %c56_92 = arith.constant 56 : index
    %c0_93 = arith.constant 0 : index
    %405 = vector.load %arg10[%c56_92, %c0_93] : memref<64x32xf32, #tpu.memory_space<vmem>>, vector<8x32xf32>
    tpu.vector_store %arg10[%c56_92, %c0_93], %404 {strides = array<i32>} : memref<64x32xf32, #tpu.memory_space<vmem>>, vector<8x32xf32>,
    %cst_94 = arith.constant 0.000000e+00 : f32
    %406 = vector.broadcast %cst_94 : f32 to vector<8x256xf32>
    %c0_95 = arith.constant 0 : index
    %c0_96 = arith.constant 0 : index
    %407 = vector.load %arg11[%c0_95, %c0_96] : memref<8x256xf32, #tpu.memory_space<vmem>>, vector<8x256xf32>
    tpu.vector_store %arg11[%c0_95, %c0_96], %406 {strides = array<i32>} : memref<8x256xf32, #tpu.memory_space<vmem>>, vector<8x256xf32>,
    %c0_97 = arith.constant 0 : index
    %c0_98 = arith.constant 0 : index
    %408 = vector.load %arg10[%c0_97, %c0_98] : memref<64x32xf32, #tpu.memory_space<vmem>>, vector<64x32xf32>
    %409 = vector.extract_strided_slice %408 {offsets = [0, 0], sizes = [1, 32], strides = [1, 1]} : vector<64x32xf32> to vector<1x32xf32>
    %c0_99 = arith.constant 0 : index
    %c0_100 = arith.constant 0 : index
    %410 = vector.load %arg11[%c0_99, %c0_100] : memref<8x256xf32, #tpu.memory_space<vmem>>, vector<1x32xf32>
    tpu.vector_store %arg11[%c0_99, %c0_100], %409 {strides = array<i32>} : memref<8x256xf32, #tpu.memory_space<vmem>>, vector<1x32xf32>,
    %411 = vector.extract_strided_slice %408 {offsets = [1, 0], sizes = [1, 32], strides = [1, 1]} : vector<64x32xf32> to vector<1x32xf32>
    %c0_101 = arith.constant 0 : index
    %c32_102 = arith.constant 32 : index
    %412 = vector.load %arg11[%c0_101, %c32_102] : memref<8x256xf32, #tpu.memory_space<vmem>>, vector<1x32xf32>
    tpu.vector_store %arg11[%c0_101, %c32_102], %411 {strides = array<i32>} : memref<8x256xf32, #tpu.memory_space<vmem>>, vector<1x32xf32>,
    %413 = vector.extract_strided_slice %408 {offsets = [8, 0], sizes = [1, 32], strides = [1, 1]} : vector<64x32xf32> to vector<1x32xf32>
    %c0_103 = arith.constant 0 : index
    %c64 = arith.constant 64 : index
    %414 = vector.load %arg11[%c0_103, %c64] : memref<8x256xf32, #tpu.memory_space<vmem>>, vector<1x32xf32>
    tpu.vector_store %arg11[%c0_103, %c64], %413 {strides = array<i32>} : memref<8x256xf32, #tpu.memory_space<vmem>>, vector<1x32xf32>,
    %415 = vector.extract_strided_slice %408 {offsets = [9, 0], sizes = [1, 32], strides = [1, 1]} : vector<64x32xf32> to vector<1x32xf32>
    %c0_104 = arith.constant 0 : index
    %c96 = arith.constant 96 : index
    %416 = vector.load %arg11[%c0_104, %c96] : memref<8x256xf32, #tpu.memory_space<vmem>>, vector<1x32xf32>
    tpu.vector_store %arg11[%c0_104, %c96], %415 {strides = array<i32>} : memref<8x256xf32, #tpu.memory_space<vmem>>, vector<1x32xf32>,
    %417 = vector.extract_strided_slice %408 {offsets = [16, 0], sizes = [1, 32], strides = [1, 1]} : vector<64x32xf32> to vector<1x32xf32>
    %c0_105 = arith.constant 0 : index
    %c128 = arith.constant 128 : index
    %418 = vector.load %arg11[%c0_105, %c128] : memref<8x256xf32, #tpu.memory_space<vmem>>, vector<1x32xf32>
    tpu.vector_store %arg11[%c0_105, %c128], %417 {strides = array<i32>} : memref<8x256xf32, #tpu.memory_space<vmem>>, vector<1x32xf32>,
    %419 = vector.extract_strided_slice %408 {offsets = [17, 0], sizes = [1, 32], strides = [1, 1]} : vector<64x32xf32> to vector<1x32xf32>
    %c0_106 = arith.constant 0 : index
    %c160 = arith.constant 160 : index
    %420 = vector.load %arg11[%c0_106, %c160] : memref<8x256xf32, #tpu.memory_space<vmem>>, vector<1x32xf32>
    tpu.vector_store %arg11[%c0_106, %c160], %419 {strides = array<i32>} : memref<8x256xf32, #tpu.memory_space<vmem>>, vector<1x32xf32>,
    %421 = vector.extract_strided_slice %408 {offsets = [24, 0], sizes = [1, 32], strides = [1, 1]} : vector<64x32xf32> to vector<1x32xf32>
    %c0_107 = arith.constant 0 : index
    %c192 = arith.constant 192 : index
    %422 = vector.load %arg11[%c0_107, %c192] : memref<8x256xf32, #tpu.memory_space<vmem>>, vector<1x32xf32>
    tpu.vector_store %arg11[%c0_107, %c192], %421 {strides = array<i32>} : memref<8x256xf32, #tpu.memory_space<vmem>>, vector<1x32xf32>,
    %423 = vector.extract_strided_slice %408 {offsets = [25, 0], sizes = [1, 32], strides = [1, 1]} : vector<64x32xf32> to vector<1x32xf32>
    %c0_108 = arith.constant 0 : index
    %c224 = arith.constant 224 : index
    %424 = vector.load %arg11[%c0_108, %c224] : memref<8x256xf32, #tpu.memory_space<vmem>>, vector<1x32xf32>
    tpu.vector_store %arg11[%c0_108, %c224], %423 {strides = array<i32>} : memref<8x256xf32, #tpu.memory_space<vmem>>, vector<1x32xf32>,
    %425 = vector.extract_strided_slice %408 {offsets = [32, 0], sizes = [1, 32], strides = [1, 1]} : vector<64x32xf32> to vector<1x32xf32>
    %c1_109 = arith.constant 1 : index
    %c0_110 = arith.constant 0 : index
    %426 = vector.load %arg11[%c1_109, %c0_110] : memref<8x256xf32, #tpu.memory_space<vmem>>, vector<1x32xf32>
    tpu.vector_store %arg11[%c1_109, %c0_110], %425 {strides = array<i32>} : memref<8x256xf32, #tpu.memory_space<vmem>>, vector<1x32xf32>,
    %427 = vector.extract_strided_slice %408 {offsets = [33, 0], sizes = [1, 32], strides = [1, 1]} : vector<64x32xf32> to vector<1x32xf32>
    %c1_111 = arith.constant 1 : index
    %c32_112 = arith.constant 32 : index
    %428 = vector.load %arg11[%c1_111, %c32_112] : memref<8x256xf32, #tpu.memory_space<vmem>>, vector<1x32xf32>
    tpu.vector_store %arg11[%c1_111, %c32_112], %427 {strides = array<i32>} : memref<8x256xf32, #tpu.memory_space<vmem>>, vector<1x32xf32>,
    %429 = vector.extract_strided_slice %408 {offsets = [40, 0], sizes = [1, 32], strides = [1, 1]} : vector<64x32xf32> to vector<1x32xf32>
    %c1_113 = arith.constant 1 : index
    %c64_114 = arith.constant 64 : index
    %430 = vector.load %arg11[%c1_113, %c64_114] : memref<8x256xf32, #tpu.memory_space<vmem>>, vector<1x32xf32>
    tpu.vector_store %arg11[%c1_113, %c64_114], %429 {strides = array<i32>} : memref<8x256xf32, #tpu.memory_space<vmem>>, vector<1x32xf32>,
    %431 = vector.extract_strided_slice %408 {offsets = [41, 0], sizes = [1, 32], strides = [1, 1]} : vector<64x32xf32> to vector<1x32xf32>
    %c1_115 = arith.constant 1 : index
    %c96_116 = arith.constant 96 : index
    %432 = vector.load %arg11[%c1_115, %c96_116] : memref<8x256xf32, #tpu.memory_space<vmem>>, vector<1x32xf32>
    tpu.vector_store %arg11[%c1_115, %c96_116], %431 {strides = array<i32>} : memref<8x256xf32, #tpu.memory_space<vmem>>, vector<1x32xf32>,
    %433 = vector.extract_strided_slice %408 {offsets = [48, 0], sizes = [1, 32], strides = [1, 1]} : vector<64x32xf32> to vector<1x32xf32>
    %c1_117 = arith.constant 1 : index
    %c128_118 = arith.constant 128 : index
    %434 = vector.load %arg11[%c1_117, %c128_118] : memref<8x256xf32, #tpu.memory_space<vmem>>, vector<1x32xf32>
    tpu.vector_store %arg11[%c1_117, %c128_118], %433 {strides = array<i32>} : memref<8x256xf32, #tpu.memory_space<vmem>>, vector<1x32xf32>,
    %435 = vector.extract_strided_slice %408 {offsets = [49, 0], sizes = [1, 32], strides = [1, 1]} : vector<64x32xf32> to vector<1x32xf32>
    %c1_119 = arith.constant 1 : index
    %c160_120 = arith.constant 160 : index
    %436 = vector.load %arg11[%c1_119, %c160_120] : memref<8x256xf32, #tpu.memory_space<vmem>>, vector<1x32xf32>
    tpu.vector_store %arg11[%c1_119, %c160_120], %435 {strides = array<i32>} : memref<8x256xf32, #tpu.memory_space<vmem>>, vector<1x32xf32>,
    %437 = vector.extract_strided_slice %408 {offsets = [56, 0], sizes = [1, 32], strides = [1, 1]} : vector<64x32xf32> to vector<1x32xf32>
    %c1_121 = arith.constant 1 : index
    %c192_122 = arith.constant 192 : index
    %438 = vector.load %arg11[%c1_121, %c192_122] : memref<8x256xf32, #tpu.memory_space<vmem>>, vector<1x32xf32>
    tpu.vector_store %arg11[%c1_121, %c192_122], %437 {strides = array<i32>} : memref<8x256xf32, #tpu.memory_space<vmem>>, vector<1x32xf32>,
    %439 = vector.extract_strided_slice %408 {offsets = [57, 0], sizes = [1, 32], strides = [1, 1]} : vector<64x32xf32> to vector<1x32xf32>
    %c1_123 = arith.constant 1 : index
    %c224_124 = arith.constant 224 : index
    %440 = vector.load %arg11[%c1_123, %c224_124] : memref<8x256xf32, #tpu.memory_space<vmem>>, vector<1x32xf32>
    tpu.vector_store %arg11[%c1_123, %c224_124], %439 {strides = array<i32>} : memref<8x256xf32, #tpu.memory_space<vmem>>, vector<1x32xf32>,
    %c0_125 = arith.constant 0 : index
    %c0_126 = arith.constant 0 : index
    %441 = vector.load %arg11[%c0_125, %c0_126] : memref<8x256xf32, #tpu.memory_space<vmem>>, vector<8x256xf32>
    %c0_127 = arith.constant 0 : index
    %c0_128 = arith.constant 0 : index
    %442 = vector.load %arg7[%c0_127, %c0_128] : memref<256x128xf32, #tpu.memory_space<vmem>>, vector<256x128xf32>
    %cst_129 = arith.constant dense<0.000000e+00> : vector<8x128xf32>
    %443 = tpu.matmul %441, %442, %cst_129 {dimension_numbers = #tpu.dot_dimension_numbers<[1], [0], [0], [1], [0, 0, 1, 1], [], []>} : vector<8x256xf32>, vector<256x128xf32>, vector<8x128xf32> -> vector<8x128xf32>
    %c0_130 = arith.constant 0 : index
    %c0_131 = arith.constant 0 : index
    %444 = vector.load %arg8[%c0_130, %c0_131] : memref<1x128xf32, #tpu.memory_space<vmem>>, vector<1x128xf32>
    %445 = vector.broadcast %444 : vector<1x128xf32> to vector<8x128xf32>
    %446 = arith.addf %443, %445 : vector<8x128xf32>
    %c0_132 = arith.constant 0 : index
    %c0_133 = arith.constant 0 : index
    %447 = vector.load %arg9[%c0_132, %c0_133] : memref<8x128xf32, #tpu.memory_space<vmem>>, vector<8x128xf32>
    tpu.vector_store %arg9[%c0_132, %c0_133], %446 {strides = array<i32>} : memref<8x128xf32, #tpu.memory_space<vmem>>, vector<8x128xf32>,
    return
  }
}

</mosaic_0001>

<llo_original>
// kernel: simple_gru_forward.1
$region0: #{simple_gru_forward.1}
  #allocation0 [shape = 'u32[]', space=smem, size = 0x4, offset = 0x4, fixed_abs, tag = 'smem constant byte address 0x4 - core index']
  #allocation1 [shape = 'u32[72,128]{1,0:T(1,128)}', space=vmem, size = 0x9000, scoped, tag = 'internal scratch']
  #allocation2 [shape = 'f32[64,32]{1,0:T(8,128)}', space=vmem, size = 0x8000, scoped, tag = 'scratch operand']
  #allocation3 [shape = 'f32[8,256]{1,0:T(8,128)}', space=vmem, size = 0x2000, scoped, tag = 'scratch operand']
  %s0 = inlined_call_operand.vmem [shape: f32[64,4], index: 0, kind: input, shape index: {}]
  %s1 = inlined_call_operand.vmem [shape: f32[4,96], index: 1, kind: input, shape index: {}]
  %s2 = inlined_call_operand.vmem [shape: f32[32,96], index: 2, kind: input, shape index: {}]
  %s3 = inlined_call_operand.vmem [shape: f32[2,96], index: 3, kind: input, shape index: {}]
  %s4 = inlined_call_operand.vmem [shape: f32[32,96], index: 4, kind: input, shape index: {}]
  %s5 = inlined_call_operand.vmem [shape: f32[32,96], index: 5, kind: input, shape index: {}]
  %s6 = inlined_call_operand.vmem [shape: f32[2,96], index: 6, kind: input, shape index: {}]
  %s7 = inlined_call_operand.vmem [shape: f32[256,128], index: 7, kind: input, shape index: {}]
  %s8 = inlined_call_operand.vmem [shape: f32[1,128], index: 8, kind: input, shape index: {}]
  %s9 = inlined_call_operand.vmem [shape: f32[8,128], index: 9, kind: output, shape index: {}]
  %s10 = sld [smem:[#allocation0]]
  $region46: #{simple_gru_forward.1} parent=0
    _
  %s12 = ssub.s32 1, %s10
  %s13 = scalar_select 0, %s12, %s10
  // Predicated region
  $region2: #{simple_gru_forward.1} parent=0 // pred_check
    _
  $region3: #{simple_gru_forward.1} parent=0 // pred_check_branch
    %15 = sbr.rel (0) target = $region5
  $region4: #{simple_gru_forward.1} parent=0 // pred_region
    _
  $region5: #{simple_gru_forward.1} parent=0 // pred_fallthru
    _
  // Predicated region
  $region6: #{simple_gru_forward.1} parent=0 // pred_check
    _
  $region7: #{simple_gru_forward.1} parent=0 // pred_check_branch
    %17 = sbr.rel (0) target = $region9
  $region8: #{simple_gru_forward.1} parent=0 // pred_region
    _
  $region9: #{simple_gru_forward.1} parent=0 // pred_fallthru
    _
  // Predicated region
  $region10: #{simple_gru_forward.1} parent=0 // pred_check
    _
  $region11: #{simple_gru_forward.1} parent=0 // pred_check_branch
    %19 = sbr.rel (0) target = $region13
  $region12: #{simple_gru_forward.1} parent=0 // pred_region
    _
  $region13: #{simple_gru_forward.1} parent=0 // pred_fallthru
    _
  // Predicated region
  $region14: #{simple_gru_forward.1} parent=0 // pred_check
    _
  $region15: #{simple_gru_forward.1} parent=0 // pred_check_branch
    %21 = sbr.rel (0) target = $region17
  $region16: #{simple_gru_forward.1} parent=0 // pred_region
    _
  $region17: #{simple_gru_forward.1} parent=0 // pred_fallthru
    _
  // Predicated region
  $region18: #{simple_gru_forward.1} parent=0 // pred_check
    _
  $region19: #{simple_gru_forward.1} parent=0 // pred_check_branch
    %23 = sbr.rel (0) target = $region21
  $region20: #{simple_gru_forward.1} parent=0 // pred_region
    _
  $region21: #{simple_gru_forward.1} parent=0 // pred_fallthru
    _
  // Predicated region
  $region22: #{simple_gru_forward.1} parent=0 // pred_check
    _
  $region23: #{simple_gru_forward.1} parent=0 // pred_check_branch
    %25 = sbr.rel (0) target = $region25
  $region24: #{simple_gru_forward.1} parent=0 // pred_region
    _
  $region25: #{simple_gru_forward.1} parent=0 // pred_fallthru
    _
  // Predicated region
  $region26: #{simple_gru_forward.1} parent=0 // pred_check
    _
  $region27: #{simple_gru_forward.1} parent=0 // pred_check_branch
    %27 = sbr.rel (0) target = $region29
  $region28: #{simple_gru_forward.1} parent=0 // pred_region
    _
  $region29: #{simple_gru_forward.1} parent=0 // pred_fallthru
    _
  // Predicated region
  $region30: #{simple_gru_forward.1} parent=0 // pred_check
    _
  $region31: #{simple_gru_forward.1} parent=0 // pred_check_branch
    %29 = sbr.rel (0) target = $region33
  $region32: #{simple_gru_forward.1} parent=0 // pred_region
    _
  $region33: #{simple_gru_forward.1} parent=0 // pred_fallthru
    _
  // Predicated region
  $region34: #{simple_gru_forward.1} parent=0 // pred_check
    _
  $region35: #{simple_gru_forward.1} parent=0 // pred_check_branch
    %31 = sbr.rel (0) target = $region37
  $region36: #{simple_gru_forward.1} parent=0 // pred_region
    _
  $region37: #{simple_gru_forward.1} parent=0 // pred_fallthru
    _
  %v32 = vld [vmem:[%s0] sm:$0xff]
  %v33 = vld [vmem:[%s0 + $0x8] sm:$0xff]
  %v34 = vld [vmem:[%s0 + $0x10] sm:$0xff]
  %v35 = vld [vmem:[%s0 + $0x18] sm:$0xff]
  %v36 = vld [vmem:[%s0 + $0x20] sm:$0xff]
  %v37 = vld [vmem:[%s0 + $0x28] sm:$0xff]
  %v38 = vld [vmem:[%s0 + $0x30] sm:$0xff]
  %v39 = vld [vmem:[%s0 + $0x38] sm:$0xff]
  %v40 = vld [vmem:[%s1] sm:$0xf]
  %v41 = vld [vmem:[%s3] sm:$0x1]
  %v42 = vperm.slane %v41, 0
  %vm43 = vcmask 31744
  %v45 = vsel %vm43, %v32, 0
  %v48 = vsel %vm43, %v33, 0
  %v51 = vsel %vm43, %v34, 0
  %v54 = vsel %vm43, %v35, 0
  %v57 = vsel %vm43, %v36, 0
  %v60 = vsel %vm43, %v37, 0
  %v63 = vsel %vm43, %v38, 0
  %v66 = vsel %vm43, %v39, 0
  %vm68 = vcmask 1043456
  %v70 = vsel %vm68, %v40, 0
  %72 = vmatpush.msra.mxu0 0.0
  %73 = vmatpush.msra.mxu0 0.0
  %74 = vmatpush.msra.mxu0 0.0
  %75 = vmatpush.msra.mxu0 0.0
  %76 = vmatpush.msra.mxu0 0.0
  %77 = vmatpush.msra.mxu0 0.0
  %78 = vmatpush.msra.mxu0 0.0
  %79 = vmatpush.msra.mxu0 0.0
  %80 = vmatpush.msra.mxu0 0.0
  %81 = vmatpush.msra.mxu0 0.0
  %82 = vmatpush.msra.mxu0 0.0
  %83 = vmatpush.msra.mxu0 0.0
  %84 = vmatpush.msra.mxu0 0.0
  %85 = vmatpush.msra.mxu0 0.0
  %86 = vmatpush.msra.mxu0 0.0
  %87 = vmatpush.msra.mxu0 %v70
  %88 = vmatmul.f32.gmra.mxu0 %v45
  %v89 = vpop.f32.mrf.mxu0
  %v90 = vadd.f32 %v42, %v89
  %91 = vmatmul.f32.gmra.mxu0 %v48
  %v92 = vpop.f32.mrf.mxu0
  %v93 = vadd.f32 %v42, %v92
  %94 = vmatmul.f32.gmra.mxu0 %v51
  %v95 = vpop.f32.mrf.mxu0
  %v96 = vadd.f32 %v42, %v95
  %97 = vmatmul.f32.gmra.mxu0 %v54
  %v98 = vpop.f32.mrf.mxu0
  %v99 = vadd.f32 %v42, %v98
  %100 = vmatmul.f32.gmra.mxu0 %v57
  %v101 = vpop.f32.mrf.mxu0
  %v102 = vadd.f32 %v42, %v101
  %103 = vmatmul.f32.gmra.mxu0 %v60
  %v104 = vpop.f32.mrf.mxu0
  %v105 = vadd.f32 %v42, %v104
  %106 = vmatmul.f32.gmra.mxu0 %v63
  %v107 = vpop.f32.mrf.mxu0
  %v108 = vadd.f32 %v42, %v107
  %109 = vmatmul.f32.gmra.mxu0 %v66
  %v110 = vpop.f32.mrf.mxu0
  %v111 = vadd.f32 %v42, %v110
  %112 = vdwg.mxu0
  %v113 = vld [vmem:[%s2] sm:$0xff]
  %v114 = vld [vmem:[%s2 + $0x8] sm:$0xff]
  %v115 = vld [vmem:[%s2 + $0x10] sm:$0xff]
  %v116 = vld [vmem:[%s2 + $0x18] sm:$0xff]
  %v117 = vld [vmem:[%s3 + $0x1] sm:$0x1]
  %v118 = vperm.slane %v117, 0
  %vm119 = vcmask 261120
  %v121 = vsel %vm119, 0.0, 0
  %123 = vmatpush.msra.mxu0 0.0
  %124 = vmatpush.msra.mxu0 0.0
  %125 = vmatpush.msra.mxu0 0.0
  %126 = vmatpush.msra.mxu0 0.0
  %127 = vmatpush.msra.mxu0 0.0
  %128 = vmatpush.msra.mxu0 0.0
  %129 = vmatpush.msra.mxu0 0.0
  %130 = vmatpush.msra.mxu0 0.0
  %131 = vmatpush.msra.mxu0 0.0
  %132 = vmatpush.msra.mxu0 0.0
  %133 = vmatpush.msra.mxu0 0.0
  %134 = vmatpush.msra.mxu0 0.0
  %135 = vmatpush.msra.mxu0 %v116
  %136 = vmatpush.msra.mxu0 %v115
  %137 = vmatpush.msra.mxu0 %v114
  %138 = vmatpush.msra.mxu0 %v113
  %139 = vmatmul.f32.gmra.mxu0 %v121
  %v140 = vpop.f32.mrf.mxu0
  %v141 = vadd.f32 %v118, %v140
  %142 = vdwg.mxu0
  %v143 = vadd.f32 %v90, %v141
  %v144 = vxor.u32 %v143, 2147483648
  %v145 = vmul.f32 %v144, 1.442695
  %v146 = vpow.pop %v145
  %v147 = vadd.f32 %v146, 1.0
  %v148 = vrcp.pop %v147
  %v149 = vmul.f32 %v147, %v148
  %v150 = vsub.f32 1.0, %v149
  %v151 = vmul.f32 %v148, %v150
  %v152 = vadd.f32 %v148, %v151
  %vm153 = vweird.f32 %v147
  %vm154 = vweird.f32 %v148
  %vm155 = vmor %vm153, %vm154
  %v156 = vsel %vm155, %v148, %v152
  %v157 = vand.u32 2147483647, %v147
  %vm158 = vcmp.eq.f32.partialorder %v157, 8.507059e+37
  %v159 = vand.u32 %v147, 2147483648
  %v160 = vor.u32 1.1754944e-38, %v159
  %v161 = vsel %vm158, %v160, %v156
  %v162 = vmul.f32 1.0, %v161
  %164 = vrot.lane.b32.xlu0 %v141, 64
  %v165 = vpop.permute.xlu0 %164
  %v167 = vmul.f32 %v162, %v165
  %169 = vrot.lane.b32.xlu0 %v167, 64
  %v170 = vpop.permute.xlu0 %169
  %v172 = vadd.f32 %v90, %v170
  %v173 = vtanh.pop %v172
  %v174 = vsub.f32 1.0, %v162
  %176 = vrot.lane.b32.xlu0 %v173, 96
  %v177 = vpop.permute.xlu0 %176
  %v179 = vmul.f32 %v174, %v177
  %v180 = vmul.f32 %v162, 0.0
  %v181 = vadd.f32 %v179, %v180
  %183 = vrot.lane.b32.xlu0 %v181, 96
  %v184 = vpop.permute.xlu0 %183
  %186 = vst.msk [vmem:[#allocation2] sm:$0xff] %vm119, %v184
  %v187 = vsel %vm119, %v184, 0
  %189 = vmatpush.msra.mxu0 0.0
  %190 = vmatpush.msra.mxu0 0.0
  %191 = vmatpush.msra.mxu0 0.0
  %192 = vmatpush.msra.mxu0 0.0
  %193 = vmatpush.msra.mxu0 0.0
  %194 = vmatpush.msra.mxu0 0.0
  %195 = vmatpush.msra.mxu0 0.0
  %196 = vmatpush.msra.mxu0 0.0
  %197 = vmatpush.msra.mxu0 0.0
  %198 = vmatpush.msra.mxu0 0.0
  %199 = vmatpush.msra.mxu0 0.0
  %200 = vmatpush.msra.mxu0 0.0
  %201 = vmatpush.msra.mxu0 %v116
  %202 = vmatpush.msra.mxu0 %v115
  %203 = vmatpush.msra.mxu0 %v114
  %204 = vmatpush.msra.mxu0 %v113
  %205 = vmatmul.f32.gmra.mxu0 %v187
  %v206 = vpop.f32.mrf.mxu0
  %v207 = vadd.f32 %v118, %v206
  %208 = vdwg.mxu0
  %v209 = vadd.f32 %v93, %v207
  %v210 = vxor.u32 %v209, 2147483648
  %v211 = vmul.f32 %v210, 1.442695
  %v212 = vpow.pop %v211
  %v213 = vadd.f32 %v212, 1.0
  %v214 = vrcp.pop %v213
  %v215 = vmul.f32 %v213, %v214
  %v216 = vsub.f32 1.0, %v215
  %v217 = vmul.f32 %v214, %v216
  %v218 = vadd.f32 %v214, %v217
  %vm219 = vweird.f32 %v213
  %vm220 = vweird.f32 %v214
  %vm221 = vmor %vm219, %vm220
  %v222 = vsel %vm221, %v214, %v218
  %v223 = vand.u32 2147483647, %v213
  %vm224 = vcmp.eq.f32.partialorder %v223, 8.507059e+37
  %v225 = vand.u32 %v213, 2147483648
  %v226 = vor.u32 1.1754944e-38, %v225
  %v227 = vsel %vm224, %v226, %v222
  %v228 = vmul.f32 1.0, %v227
  %230 = vrot.lane.b32.xlu0 %v207, 64
  %v231 = vpop.permute.xlu0 %230
  %v233 = vmul.f32 %v228, %v231
  %235 = vrot.lane.b32.xlu0 %v233, 64
  %v236 = vpop.permute.xlu0 %235
  %v238 = vadd.f32 %v93, %v236
  %v239 = vtanh.pop %v238
  %v240 = vsub.f32 1.0, %v228
  %242 = vrot.lane.b32.xlu0 %v239, 96
  %v243 = vpop.permute.xlu0 %242
  %v245 = vmul.f32 %v240, %v243
  %v246 = vmul.f32 %v228, %v181
  %v247 = vadd.f32 %v245, %v246
  %249 = vrot.lane.b32.xlu0 %v247, 96
  %v250 = vpop.permute.xlu0 %249
  %252 = vst.msk [vmem:[#allocation2 + $0x8] sm:$0xff] %vm119, %v250
  %v253 = vsel %vm119, %v250, 0
  %255 = vmatpush.msra.mxu0 0.0
  %256 = vmatpush.msra.mxu0 0.0
  %257 = vmatpush.msra.mxu0 0.0
  %258 = vmatpush.msra.mxu0 0.0
  %259 = vmatpush.msra.mxu0 0.0
  %260 = vmatpush.msra.mxu0 0.0
  %261 = vmatpush.msra.mxu0 0.0
  %262 = vmatpush.msra.mxu0 0.0
  %263 = vmatpush.msra.mxu0 0.0
  %264 = vmatpush.msra.mxu0 0.0
  %265 = vmatpush.msra.mxu0 0.0
  %266 = vmatpush.msra.mxu0 0.0
  %267 = vmatpush.msra.mxu0 %v116
  %268 = vmatpush.msra.mxu0 %v115
  %269 = vmatpush.msra.mxu0 %v114
  %270 = vmatpush.msra.mxu0 %v113
  %271 = vmatmul.f32.gmra.mxu0 %v253
  %v272 = vpop.f32.mrf.mxu0
  %v273 = vadd.f32 %v118, %v272
  %274 = vdwg.mxu0
  %v275 = vadd.f32 %v96, %v273
  %v276 = vxor.u32 %v275, 2147483648
  %v277 = vmul.f32 %v276, 1.442695
  %v278 = vpow.pop %v277
  %v279 = vadd.f32 %v278, 1.0
  %v280 = vrcp.pop %v279
  %v281 = vmul.f32 %v279, %v280
  %v282 = vsub.f32 1.0, %v281
  %v283 = vmul.f32 %v280, %v282
  %v284 = vadd.f32 %v280, %v283
  %vm285 = vweird.f32 %v279
  %vm286 = vweird.f32 %v280
  %vm287 = vmor %vm285, %vm286
  %v288 = vsel %vm287, %v280, %v284
  %v289 = vand.u32 2147483647, %v279
  %vm290 = vcmp.eq.f32.partialorder %v289, 8.507059e+37
  %v291 = vand.u32 %v279, 2147483648
  %v292 = vor.u32 1.1754944e-38, %v291
  %v293 = vsel %vm290, %v292, %v288
  %v294 = vmul.f32 1.0, %v293
  %296 = vrot.lane.b32.xlu0 %v273, 64
  %v297 = vpop.permute.xlu0 %296
  %v299 = vmul.f32 %v294, %v297
  %301 = vrot.lane.b32.xlu0 %v299, 64
  %v302 = vpop.permute.xlu0 %301
  %v304 = vadd.f32 %v96, %v302
  %v305 = vtanh.pop %v304
  %v306 = vsub.f32 1.0, %v294
  %308 = vrot.lane.b32.xlu0 %v305, 96
  %v309 = vpop.permute.xlu0 %308
  %v311 = vmul.f32 %v306, %v309
  %v312 = vmul.f32 %v294, %v247
  %v313 = vadd.f32 %v311, %v312
  %315 = vrot.lane.b32.xlu0 %v313, 96
  %v316 = vpop.permute.xlu0 %315
  %318 = vst.msk [vmem:[#allocation2 + $0x10] sm:$0xff] %vm119, %v316
  %v319 = vsel %vm119, %v316, 0
  %321 = vmatpush.msra.mxu0 0.0
  %322 = vmatpush.msra.mxu0 0.0
  %323 = vmatpush.msra.mxu0 0.0
  %324 = vmatpush.msra.mxu0 0.0
  %325 = vmatpush.msra.mxu0 0.0
  %326 = vmatpush.msra.mxu0 0.0
  %327 = vmatpush.msra.mxu0 0.0
  %328 = vmatpush.msra.mxu0 0.0
  %329 = vmatpush.msra.mxu0 0.0
  %330 = vmatpush.msra.mxu0 0.0
  %331 = vmatpush.msra.mxu0 0.0
  %332 = vmatpush.msra.mxu0 0.0
  %333 = vmatpush.msra.mxu0 %v116
  %334 = vmatpush.msra.mxu0 %v115
  %335 = vmatpush.msra.mxu0 %v114
  %336 = vmatpush.msra.mxu0 %v113
  %337 = vmatmul.f32.gmra.mxu0 %v319
  %v338 = vpop.f32.mrf.mxu0
  %v339 = vadd.f32 %v118, %v338
  %340 = vdwg.mxu0
  %v341 = vadd.f32 %v99, %v339
  %v342 = vxor.u32 %v341, 2147483648
  %v343 = vmul.f32 %v342, 1.442695
  %v344 = vpow.pop %v343
  %v345 = vadd.f32 %v344, 1.0
  %v346 = vrcp.pop %v345
  %v347 = vmul.f32 %v345, %v346
  %v348 = vsub.f32 1.0, %v347
  %v349 = vmul.f32 %v346, %v348
  %v350 = vadd.f32 %v346, %v349
  %vm351 = vweird.f32 %v345
  %vm352 = vweird.f32 %v346
  %vm353 = vmor %vm351, %vm352
  %v354 = vsel %vm353, %v346, %v350
  %v355 = vand.u32 2147483647, %v345
  %vm356 = vcmp.eq.f32.partialorder %v355, 8.507059e+37
  %v357 = vand.u32 %v345, 2147483648
  %v358 = vor.u32 1.1754944e-38, %v357
  %v359 = vsel %vm356, %v358, %v354
  %v360 = vmul.f32 1.0, %v359
  %362 = vrot.lane.b32.xlu0 %v339, 64
  %v363 = vpop.permute.xlu0 %362
  %v365 = vmul.f32 %v360, %v363
  %367 = vrot.lane.b32.xlu0 %v365, 64
  %v368 = vpop.permute.xlu0 %367
  %v370 = vadd.f32 %v99, %v368
  %v371 = vtanh.pop %v370
  %v372 = vsub.f32 1.0, %v360
  %374 = vrot.lane.b32.xlu0 %v371, 96
  %v375 = vpop.permute.xlu0 %374
  %v377 = vmul.f32 %v372, %v375
  %v378 = vmul.f32 %v360, %v313
  %v379 = vadd.f32 %v377, %v378
  %381 = vrot.lane.b32.xlu0 %v379, 96
  %v382 = vpop.permute.xlu0 %381
  %384 = vst.msk [vmem:[#allocation2 + $0x18] sm:$0xff] %vm119, %v382
  %v385 = vsel %vm119, %v382, 0
  %387 = vmatpush.msra.mxu0 0.0
  %388 = vmatpush.msra.mxu0 0.0
  %389 = vmatpush.msra.mxu0 0.0
  %390 = vmatpush.msra.mxu0 0.0
  %391 = vmatpush.msra.mxu0 0.0
  %392 = vmatpush.msra.mxu0 0.0
  %393 = vmatpush.msra.mxu0 0.0
  %394 = vmatpush.msra.mxu0 0.0
  %395 = vmatpush.msra.mxu0 0.0
  %396 = vmatpush.msra.mxu0 0.0
  %397 = vmatpush.msra.mxu0 0.0
  %398 = vmatpush.msra.mxu0 0.0
  %399 = vmatpush.msra.mxu0 %v116
  %400 = vmatpush.msra.mxu0 %v115
  %401 = vmatpush.msra.mxu0 %v114
  %402 = vmatpush.msra.mxu0 %v113
  %403 = vmatmul.f32.gmra.mxu0 %v385
  %v404 = vpop.f32.mrf.mxu0
  %v405 = vadd.f32 %v118, %v404
  %406 = vdwg.mxu0
  %v407 = vadd.f32 %v102, %v405
  %v408 = vxor.u32 %v407, 2147483648
  %v409 = vmul.f32 %v408, 1.442695
  %v410 = vpow.pop %v409
  %v411 = vadd.f32 %v410, 1.0
  %v412 = vrcp.pop %v411
  %v413 = vmul.f32 %v411, %v412
  %v414 = vsub.f32 1.0, %v413
  %v415 = vmul.f32 %v412, %v414
  %v416 = vadd.f32 %v412, %v415
  %vm417 = vweird.f32 %v411
  %vm418 = vweird.f32 %v412
  %vm419 = vmor %vm417, %vm418
  %v420 = vsel %vm419, %v412, %v416
  %v421 = vand.u32 2147483647, %v411
  %vm422 = vcmp.eq.f32.partialorder %v421, 8.507059e+37
  %v423 = vand.u32 %v411, 2147483648
  %v424 = vor.u32 1.1754944e-38, %v423
  %v425 = vsel %vm422, %v424, %v420
  %v426 = vmul.f32 1.0, %v425
  %428 = vrot.lane.b32.xlu0 %v405, 64
  %v429 = vpop.permute.xlu0 %428
  %v431 = vmul.f32 %v426, %v429
  %433 = vrot.lane.b32.xlu0 %v431, 64
  %v434 = vpop.permute.xlu0 %433
  %v436 = vadd.f32 %v102, %v434
  %v437 = vtanh.pop %v436
  %v438 = vsub.f32 1.0, %v426
  %440 = vrot.lane.b32.xlu0 %v437, 96
  %v441 = vpop.permute.xlu0 %440
  %v443 = vmul.f32 %v438, %v441
  %v444 = vmul.f32 %v426, %v379
  %v445 = vadd.f32 %v443, %v444
  %447 = vrot.lane.b32.xlu0 %v445, 96
  %v448 = vpop.permute.xlu0 %447
  %450 = vst.msk [vmem:[#allocation2 + $0x20] sm:$0xff] %vm119, %v448
  %v451 = vsel %vm119, %v448, 0
  %453 = vmatpush.msra.mxu0 0.0
  %454 = vmatpush.msra.mxu0 0.0
  %455 = vmatpush.msra.mxu0 0.0
  %456 = vmatpush.msra.mxu0 0.0
  %457 = vmatpush.msra.mxu0 0.0
  %458 = vmatpush.msra.mxu0 0.0
  %459 = vmatpush.msra.mxu0 0.0
  %460 = vmatpush.msra.mxu0 0.0
  %461 = vmatpush.msra.mxu0 0.0
  %462 = vmatpush.msra.mxu0 0.0
  %463 = vmatpush.msra.mxu0 0.0
  %464 = vmatpush.msra.mxu0 0.0
  %465 = vmatpush.msra.mxu0 %v116
  %466 = vmatpush.msra.mxu0 %v115
  %467 = vmatpush.msra.mxu0 %v114
  %468 = vmatpush.msra.mxu0 %v113
  %469 = vmatmul.f32.gmra.mxu0 %v451
  %v470 = vpop.f32.mrf.mxu0
  %v471 = vadd.f32 %v118, %v470
  %472 = vdwg.mxu0
  %v473 = vadd.f32 %v105, %v471
  %v474 = vxor.u32 %v473, 2147483648
  %v475 = vmul.f32 %v474, 1.442695
  %v476 = vpow.pop %v475
  %v477 = vadd.f32 %v476, 1.0
  %v478 = vrcp.pop %v477
  %v479 = vmul.f32 %v477, %v478
  %v480 = vsub.f32 1.0, %v479
  %v481 = vmul.f32 %v478, %v480
  %v482 = vadd.f32 %v478, %v481
  %vm483 = vweird.f32 %v477
  %vm484 = vweird.f32 %v478
  %vm485 = vmor %vm483, %vm484
  %v486 = vsel %vm485, %v478, %v482
  %v487 = vand.u32 2147483647, %v477
  %vm488 = vcmp.eq.f32.partialorder %v487, 8.507059e+37
  %v489 = vand.u32 %v477, 2147483648
  %v490 = vor.u32 1.1754944e-38, %v489
  %v491 = vsel %vm488, %v490, %v486
  %v492 = vmul.f32 1.0, %v491
  %494 = vrot.lane.b32.xlu0 %v471, 64
  %v495 = vpop.permute.xlu0 %494
  %v497 = vmul.f32 %v492, %v495
  %499 = vrot.lane.b32.xlu0 %v497, 64
  %v500 = vpop.permute.xlu0 %499
  %v502 = vadd.f32 %v105, %v500
  %v503 = vtanh.pop %v502
  %v504 = vsub.f32 1.0, %v492
  %506 = vrot.lane.b32.xlu0 %v503, 96
  %v507 = vpop.permute.xlu0 %506
  %v509 = vmul.f32 %v504, %v507
  %v510 = vmul.f32 %v492, %v445
  %v511 = vadd.f32 %v509, %v510
  %513 = vrot.lane.b32.xlu0 %v511, 96
  %v514 = vpop.permute.xlu0 %513
  %516 = vst.msk [vmem:[#allocation2 + $0x28] sm:$0xff] %vm119, %v514
  %v517 = vsel %vm119, %v514, 0
  %519 = vmatpush.msra.mxu0 0.0
  %520 = vmatpush.msra.mxu0 0.0
  %521 = vmatpush.msra.mxu0 0.0
  %522 = vmatpush.msra.mxu0 0.0
  %523 = vmatpush.msra.mxu0 0.0
  %524 = vmatpush.msra.mxu0 0.0
  %525 = vmatpush.msra.mxu0 0.0
  %526 = vmatpush.msra.mxu0 0.0
  %527 = vmatpush.msra.mxu0 0.0
  %528 = vmatpush.msra.mxu0 0.0
  %529 = vmatpush.msra.mxu0 0.0
  %530 = vmatpush.msra.mxu0 0.0
  %531 = vmatpush.msra.mxu0 %v116
  %532 = vmatpush.msra.mxu0 %v115
  %533 = vmatpush.msra.mxu0 %v114
  %534 = vmatpush.msra.mxu0 %v113
  %535 = vmatmul.f32.gmra.mxu0 %v517
  %v536 = vpop.f32.mrf.mxu0
  %v537 = vadd.f32 %v118, %v536
  %538 = vdwg.mxu0
  %v539 = vadd.f32 %v108, %v537
  %v540 = vxor.u32 %v539, 2147483648
  %v541 = vmul.f32 %v540, 1.442695
  %v542 = vpow.pop %v541
  %v543 = vadd.f32 %v542, 1.0
  %v544 = vrcp.pop %v543
  %v545 = vmul.f32 %v543, %v544
  %v546 = vsub.f32 1.0, %v545
  %v547 = vmul.f32 %v544, %v546
  %v548 = vadd.f32 %v544, %v547
  %vm549 = vweird.f32 %v543
  %vm550 = vweird.f32 %v544
  %vm551 = vmor %vm549, %vm550
  %v552 = vsel %vm551, %v544, %v548
  %v553 = vand.u32 2147483647, %v543
  %vm554 = vcmp.eq.f32.partialorder %v553, 8.507059e+37
  %v555 = vand.u32 %v543, 2147483648
  %v556 = vor.u32 1.1754944e-38, %v555
  %v557 = vsel %vm554, %v556, %v552
  %v558 = vmul.f32 1.0, %v557
  %560 = vrot.lane.b32.xlu0 %v537, 64
  %v561 = vpop.permute.xlu0 %560
  %v563 = vmul.f32 %v558, %v561
  %565 = vrot.lane.b32.xlu0 %v563, 64
  %v566 = vpop.permute.xlu0 %565
  %v568 = vadd.f32 %v108, %v566
  %v569 = vtanh.pop %v568
  %v570 = vsub.f32 1.0, %v558
  %572 = vrot.lane.b32.xlu0 %v569, 96
  %v573 = vpop.permute.xlu0 %572
  %v575 = vmul.f32 %v570, %v573
  %v576 = vmul.f32 %v558, %v511
  %v577 = vadd.f32 %v575, %v576
  %579 = vrot.lane.b32.xlu0 %v577, 96
  %v580 = vpop.permute.xlu0 %579
  %582 = vst.msk [vmem:[#allocation2 + $0x30] sm:$0xff] %vm119, %v580
  %v583 = vsel %vm119, %v580, 0
  %585 = vmatpush.msra.mxu0 0.0
  %586 = vmatpush.msra.mxu0 0.0
  %587 = vmatpush.msra.mxu0 0.0
  %588 = vmatpush.msra.mxu0 0.0
  %589 = vmatpush.msra.mxu0 0.0
  %590 = vmatpush.msra.mxu0 0.0
  %591 = vmatpush.msra.mxu0 0.0
  %592 = vmatpush.msra.mxu0 0.0
  %593 = vmatpush.msra.mxu0 0.0
  %594 = vmatpush.msra.mxu0 0.0
  %595 = vmatpush.msra.mxu0 0.0
  %596 = vmatpush.msra.mxu0 0.0
  %597 = vmatpush.msra.mxu0 %v116
  %598 = vmatpush.msra.mxu0 %v115
  %599 = vmatpush.msra.mxu0 %v114
  %600 = vmatpush.msra.mxu0 %v113
  %601 = vmatmul.f32.gmra.mxu0 %v583
  %v602 = vpop.f32.mrf.mxu0
  %v603 = vadd.f32 %v118, %v602
  %604 = vdwg.mxu0
  %v605 = vadd.f32 %v111, %v603
  %v606 = vxor.u32 %v605, 2147483648
  %v607 = vmul.f32 %v606, 1.442695
  %v608 = vpow.pop %v607
  %v609 = vadd.f32 %v608, 1.0
  %v610 = vrcp.pop %v609
  %v611 = vmul.f32 %v609, %v610
  %v612 = vsub.f32 1.0, %v611
  %v613 = vmul.f32 %v610, %v612
  %v614 = vadd.f32 %v610, %v613
  %vm615 = vweird.f32 %v609
  %vm616 = vweird.f32 %v610
  %vm617 = vmor %vm615, %vm616
  %v618 = vsel %vm617, %v610, %v614
  %v619 = vand.u32 2147483647, %v609
  %vm620 = vcmp.eq.f32.partialorder %v619, 8.507059e+37
  %v621 = vand.u32 %v609, 2147483648
  %v622 = vor.u32 1.1754944e-38, %v621
  %v623 = vsel %vm620, %v622, %v618
  %v624 = vmul.f32 1.0, %v623
  %626 = vrot.lane.b32.xlu0 %v603, 64
  %v627 = vpop.permute.xlu0 %626
  %v629 = vmul.f32 %v624, %v627
  %631 = vrot.lane.b32.xlu0 %v629, 64
  %v632 = vpop.permute.xlu0 %631
  %v634 = vadd.f32 %v111, %v632
  %v635 = vtanh.pop %v634
  %v636 = vsub.f32 1.0, %v624
  %638 = vrot.lane.b32.xlu0 %v635, 96
  %v639 = vpop.permute.xlu0 %638
  %v641 = vmul.f32 %v636, %v639
  %v642 = vmul.f32 %v624, %v577
  %v643 = vadd.f32 %v641, %v642
  %645 = vrot.lane.b32.xlu0 %v643, 96
  %v646 = vpop.permute.xlu0 %645
  %648 = vst.msk [vmem:[#allocation2 + $0x38] sm:$0xff] %vm119, %v646
  %v649 = vld [vmem:[#allocation2] sm:$0xff]
  %v650 = vld [vmem:[#allocation2 + $0x8] sm:$0xff]
  %v651 = vld [vmem:[#allocation2 + $0x10] sm:$0xff]
  %v652 = vld [vmem:[#allocation2 + $0x18] sm:$0xff]
  %v653 = vld [vmem:[#allocation2 + $0x20] sm:$0xff]
  %v654 = vld [vmem:[#allocation2 + $0x28] sm:$0xff]
  %v655 = vld [vmem:[#allocation2 + $0x30] sm:$0xff]
  %v656 = vld [vmem:[#allocation2 + $0x38] sm:$0xff]
  %v657 = vld [vmem:[%s4] sm:$0xff]
  %v658 = vld [vmem:[%s4 + $0x8] sm:$0xff]
  %v659 = vld [vmem:[%s4 + $0x10] sm:$0xff]
  %v660 = vld [vmem:[%s4 + $0x18] sm:$0xff]
  %v661 = vld [vmem:[%s6] sm:$0x1]
  %v662 = vperm.slane %v661, 0
  %v664 = vsel %vm119, %v649, 0
  %v667 = vsel %vm119, %v650, 0
  %v670 = vsel %vm119, %v651, 0
  %v673 = vsel %vm119, %v652, 0
  %v676 = vsel %vm119, %v653, 0
  %v679 = vsel %vm119, %v654, 0
  %v682 = vsel %vm119, %v655, 0
  %v685 = vsel %vm119, %v656, 0
  %687 = vmatpush.msra.mxu0 0.0
  %688 = vmatpush.msra.mxu0 0.0
  %689 = vmatpush.msra.mxu0 0.0
  %690 = vmatpush.msra.mxu0 0.0
  %691 = vmatpush.msra.mxu0 0.0
  %692 = vmatpush.msra.mxu0 0.0
  %693 = vmatpush.msra.mxu0 0.0
  %694 = vmatpush.msra.mxu0 0.0
  %695 = vmatpush.msra.mxu0 0.0
  %696 = vmatpush.msra.mxu0 0.0
  %697 = vmatpush.msra.mxu0 0.0
  %698 = vmatpush.msra.mxu0 0.0
  %699 = vmatpush.msra.mxu0 %v660
  %700 = vmatpush.msra.mxu0 %v659
  %701 = vmatpush.msra.mxu0 %v658
  %702 = vmatpush.msra.mxu0 %v657
  %703 = vmatmul.f32.gmra.mxu0 %v664
  %v704 = vpop.f32.mrf.mxu0
  %v705 = vadd.f32 %v662, %v704
  %706 = vmatmul.f32.gmra.mxu0 %v667
  %v707 = vpop.f32.mrf.mxu0
  %v708 = vadd.f32 %v662, %v707
  %709 = vmatmul.f32.gmra.mxu0 %v670
  %v710 = vpop.f32.mrf.mxu0
  %v711 = vadd.f32 %v662, %v710
  %712 = vmatmul.f32.gmra.mxu0 %v673
  %v713 = vpop.f32.mrf.mxu0
  %v714 = vadd.f32 %v662, %v713
  %715 = vmatmul.f32.gmra.mxu0 %v676
  %v716 = vpop.f32.mrf.mxu0
  %v717 = vadd.f32 %v662, %v716
  %718 = vmatmul.f32.gmra.mxu0 %v679
  %v719 = vpop.f32.mrf.mxu0
  %v720 = vadd.f32 %v662, %v719
  %721 = vmatmul.f32.gmra.mxu0 %v682
  %v722 = vpop.f32.mrf.mxu0
  %v723 = vadd.f32 %v662, %v722
  %724 = vmatmul.f32.gmra.mxu0 %v685
  %v725 = vpop.f32.mrf.mxu0
  %v726 = vadd.f32 %v662, %v725
  %727 = vdwg.mxu0
  %v728 = vld [vmem:[%s5] sm:$0xff]
  %v729 = vld [vmem:[%s5 + $0x8] sm:$0xff]
  %v730 = vld [vmem:[%s5 + $0x10] sm:$0xff]
  %v731 = vld [vmem:[%s5 + $0x18] sm:$0xff]
  %v732 = vld [vmem:[%s6 + $0x1] sm:$0x1]
  %v733 = vperm.slane %v732, 0
  %734 = vmatpush.msra.mxu0 0.0
  %735 = vmatpush.msra.mxu0 0.0
  %736 = vmatpush.msra.mxu0 0.0
  %737 = vmatpush.msra.mxu0 0.0
  %738 = vmatpush.msra.mxu0 0.0
  %739 = vmatpush.msra.mxu0 0.0
  %740 = vmatpush.msra.mxu0 0.0
  %741 = vmatpush.msra.mxu0 0.0
  %742 = vmatpush.msra.mxu0 0.0
  %743 = vmatpush.msra.mxu0 0.0
  %744 = vmatpush.msra.mxu0 0.0
  %745 = vmatpush.msra.mxu0 0.0
  %746 = vmatpush.msra.mxu0 %v731
  %747 = vmatpush.msra.mxu0 %v730
  %748 = vmatpush.msra.mxu0 %v729
  %749 = vmatpush.msra.mxu0 %v728
  %750 = vmatmul.f32.gmra.mxu0 %v121
  %v751 = vpop.f32.mrf.mxu0
  %v752 = vadd.f32 %v733, %v751
  %753 = vdwg.mxu0
  %v754 = vadd.f32 %v705, %v752
  %v755 = vxor.u32 %v754, 2147483648
  %v756 = vmul.f32 %v755, 1.442695
  %v757 = vpow.pop %v756
  %v758 = vadd.f32 %v757, 1.0
  %v759 = vrcp.pop %v758
  %v760 = vmul.f32 %v758, %v759
  %v761 = vsub.f32 1.0, %v760
  %v762 = vmul.f32 %v759, %v761
  %v763 = vadd.f32 %v759, %v762
  %vm764 = vweird.f32 %v758
  %vm765 = vweird.f32 %v759
  %vm766 = vmor %vm764, %vm765
  %v767 = vsel %vm766, %v759, %v763
  %v768 = vand.u32 2147483647, %v758
  %vm769 = vcmp.eq.f32.partialorder %v768, 8.507059e+37
  %v770 = vand.u32 %v758, 2147483648
  %v771 = vor.u32 1.1754944e-38, %v770
  %v772 = vsel %vm769, %v771, %v767
  %v773 = vmul.f32 1.0, %v772
  %775 = vrot.lane.b32.xlu0 %v752, 64
  %v776 = vpop.permute.xlu0 %775
  %v778 = vmul.f32 %v773, %v776
  %780 = vrot.lane.b32.xlu0 %v778, 64
  %v781 = vpop.permute.xlu0 %780
  %v783 = vadd.f32 %v705, %v781
  %v784 = vtanh.pop %v783
  %v785 = vsub.f32 1.0, %v773
  %787 = vrot.lane.b32.xlu0 %v784, 96
  %v788 = vpop.permute.xlu0 %787
  %v790 = vmul.f32 %v785, %v788
  %v791 = vmul.f32 %v773, 0.0
  %v792 = vadd.f32 %v790, %v791
  %794 = vrot.lane.b32.xlu0 %v792, 96
  %v795 = vpop.permute.xlu0 %794
  %797 = vst.msk [vmem:[#allocation2] sm:$0xff] %vm119, %v795
  %v798 = vsel %vm119, %v795, 0
  %800 = vmatpush.msra.mxu0 0.0
  %801 = vmatpush.msra.mxu0 0.0
  %802 = vmatpush.msra.mxu0 0.0
  %803 = vmatpush.msra.mxu0 0.0
  %804 = vmatpush.msra.mxu0 0.0
  %805 = vmatpush.msra.mxu0 0.0
  %806 = vmatpush.msra.mxu0 0.0
  %807 = vmatpush.msra.mxu0 0.0
  %808 = vmatpush.msra.mxu0 0.0
  %809 = vmatpush.msra.mxu0 0.0
  %810 = vmatpush.msra.mxu0 0.0
  %811 = vmatpush.msra.mxu0 0.0
  %812 = vmatpush.msra.mxu0 %v731
  %813 = vmatpush.msra.mxu0 %v730
  %814 = vmatpush.msra.mxu0 %v729
  %815 = vmatpush.msra.mxu0 %v728
  %816 = vmatmul.f32.gmra.mxu0 %v798
  %v817 = vpop.f32.mrf.mxu0
  %v818 = vadd.f32 %v733, %v817
  %819 = vdwg.mxu0
  %v820 = vadd.f32 %v708, %v818
  %v821 = vxor.u32 %v820, 2147483648
  %v822 = vmul.f32 %v821, 1.442695
  %v823 = vpow.pop %v822
  %v824 = vadd.f32 %v823, 1.0
  %v825 = vrcp.pop %v824
  %v826 = vmul.f32 %v824, %v825
  %v827 = vsub.f32 1.0, %v826
  %v828 = vmul.f32 %v825, %v827
  %v829 = vadd.f32 %v825, %v828
  %vm830 = vweird.f32 %v824
  %vm831 = vweird.f32 %v825
  %vm832 = vmor %vm830, %vm831
  %v833 = vsel %vm832, %v825, %v829
  %v834 = vand.u32 2147483647, %v824
  %vm835 = vcmp.eq.f32.partialorder %v834, 8.507059e+37
  %v836 = vand.u32 %v824, 2147483648
  %v837 = vor.u32 1.1754944e-38, %v836
  %v838 = vsel %vm835, %v837, %v833
  %v839 = vmul.f32 1.0, %v838
  %841 = vrot.lane.b32.xlu0 %v818, 64
  %v842 = vpop.permute.xlu0 %841
  %v844 = vmul.f32 %v839, %v842
  %846 = vrot.lane.b32.xlu0 %v844, 64
  %v847 = vpop.permute.xlu0 %846
  %v849 = vadd.f32 %v708, %v847
  %v850 = vtanh.pop %v849
  %v851 = vsub.f32 1.0, %v839
  %853 = vrot.lane.b32.xlu0 %v850, 96
  %v854 = vpop.permute.xlu0 %853
  %v856 = vmul.f32 %v851, %v854
  %v857 = vmul.f32 %v839, %v792
  %v858 = vadd.f32 %v856, %v857
  %860 = vrot.lane.b32.xlu0 %v858, 96
  %v861 = vpop.permute.xlu0 %860
  %863 = vst.msk [vmem:[#allocation2 + $0x8] sm:$0xff] %vm119, %v861
  %v864 = vsel %vm119, %v861, 0
  %866 = vmatpush.msra.mxu0 0.0
  %867 = vmatpush.msra.mxu0 0.0
  %868 = vmatpush.msra.mxu0 0.0
  %869 = vmatpush.msra.mxu0 0.0
  %870 = vmatpush.msra.mxu0 0.0
  %871 = vmatpush.msra.mxu0 0.0
  %872 = vmatpush.msra.mxu0 0.0
  %873 = vmatpush.msra.mxu0 0.0
  %874 = vmatpush.msra.mxu0 0.0
  %875 = vmatpush.msra.mxu0 0.0
  %876 = vmatpush.msra.mxu0 0.0
  %877 = vmatpush.msra.mxu0 0.0
  %878 = vmatpush.msra.mxu0 %v731
  %879 = vmatpush.msra.mxu0 %v730
  %880 = vmatpush.msra.mxu0 %v729
  %881 = vmatpush.msra.mxu0 %v728
  %882 = vmatmul.f32.gmra.mxu0 %v864
  %v883 = vpop.f32.mrf.mxu0
  %v884 = vadd.f32 %v733, %v883
  %885 = vdwg.mxu0
  %v886 = vadd.f32 %v711, %v884
  %v887 = vxor.u32 %v886, 2147483648
  %v888 = vmul.f32 %v887, 1.442695
  %v889 = vpow.pop %v888
  %v890 = vadd.f32 %v889, 1.0
  %v891 = vrcp.pop %v890
  %v892 = vmul.f32 %v890, %v891
  %v893 = vsub.f32 1.0, %v892
  %v894 = vmul.f32 %v891, %v893
  %v895 = vadd.f32 %v891, %v894
  %vm896 = vweird.f32 %v890
  %vm897 = vweird.f32 %v891
  %vm898 = vmor %vm896, %vm897
  %v899 = vsel %vm898, %v891, %v895
  %v900 = vand.u32 2147483647, %v890
  %vm901 = vcmp.eq.f32.partialorder %v900, 8.507059e+37
  %v902 = vand.u32 %v890, 2147483648
  %v903 = vor.u32 1.1754944e-38, %v902
  %v904 = vsel %vm901, %v903, %v899
  %v905 = vmul.f32 1.0, %v904
  %907 = vrot.lane.b32.xlu0 %v884, 64
  %v908 = vpop.permute.xlu0 %907
  %v910 = vmul.f32 %v905, %v908
  %912 = vrot.lane.b32.xlu0 %v910, 64
  %v913 = vpop.permute.xlu0 %912
  %v915 = vadd.f32 %v711, %v913
  %v916 = vtanh.pop %v915
  %v917 = vsub.f32 1.0, %v905
  %919 = vrot.lane.b32.xlu0 %v916, 96
  %v920 = vpop.permute.xlu0 %919
  %v922 = vmul.f32 %v917, %v920
  %v923 = vmul.f32 %v905, %v858
  %v924 = vadd.f32 %v922, %v923
  %926 = vrot.lane.b32.xlu0 %v924, 96
  %v927 = vpop.permute.xlu0 %926
  %929 = vst.msk [vmem:[#allocation2 + $0x10] sm:$0xff] %vm119, %v927
  %v930 = vsel %vm119, %v927, 0
  %932 = vmatpush.msra.mxu0 0.0
  %933 = vmatpush.msra.mxu0 0.0
  %934 = vmatpush.msra.mxu0 0.0
  %935 = vmatpush.msra.mxu0 0.0
  %936 = vmatpush.msra.mxu0 0.0
  %937 = vmatpush.msra.mxu0 0.0
  %938 = vmatpush.msra.mxu0 0.0
  %939 = vmatpush.msra.mxu0 0.0
  %940 = vmatpush.msra.mxu0 0.0
  %941 = vmatpush.msra.mxu0 0.0
  %942 = vmatpush.msra.mxu0 0.0
  %943 = vmatpush.msra.mxu0 0.0
  %944 = vmatpush.msra.mxu0 %v731
  %945 = vmatpush.msra.mxu0 %v730
  %946 = vmatpush.msra.mxu0 %v729
  %947 = vmatpush.msra.mxu0 %v728
  %948 = vmatmul.f32.gmra.mxu0 %v930
  %v949 = vpop.f32.mrf.mxu0
  %v950 = vadd.f32 %v733, %v949
  %951 = vdwg.mxu0
  %v952 = vadd.f32 %v714, %v950
  %v953 = vxor.u32 %v952, 2147483648
  %v954 = vmul.f32 %v953, 1.442695
  %v955 = vpow.pop %v954
  %v956 = vadd.f32 %v955, 1.0
  %v957 = vrcp.pop %v956
  %v958 = vmul.f32 %v956, %v957
  %v959 = vsub.f32 1.0, %v958
  %v960 = vmul.f32 %v957, %v959
  %v961 = vadd.f32 %v957, %v960
  %vm962 = vweird.f32 %v956
  %vm963 = vweird.f32 %v957
  %vm964 = vmor %vm962, %vm963
  %v965 = vsel %vm964, %v957, %v961
  %v966 = vand.u32 2147483647, %v956
  %vm967 = vcmp.eq.f32.partialorder %v966, 8.507059e+37
  %v968 = vand.u32 %v956, 2147483648
  %v969 = vor.u32 1.1754944e-38, %v968
  %v970 = vsel %vm967, %v969, %v965
  %v971 = vmul.f32 1.0, %v970
  %973 = vrot.lane.b32.xlu0 %v950, 64
  %v974 = vpop.permute.xlu0 %973
  %v976 = vmul.f32 %v971, %v974
  %978 = vrot.lane.b32.xlu0 %v976, 64
  %v979 = vpop.permute.xlu0 %978
  %v981 = vadd.f32 %v714, %v979
  %v982 = vtanh.pop %v981
  %v983 = vsub.f32 1.0, %v971
  %985 = vrot.lane.b32.xlu0 %v982, 96
  %v986 = vpop.permute.xlu0 %985
  %v988 = vmul.f32 %v983, %v986
  %v989 = vmul.f32 %v971, %v924
  %v990 = vadd.f32 %v988, %v989
  %992 = vrot.lane.b32.xlu0 %v990, 96
  %v993 = vpop.permute.xlu0 %992
  %995 = vst.msk [vmem:[#allocation2 + $0x18] sm:$0xff] %vm119, %v993
  %v996 = vsel %vm119, %v993, 0
  %998 = vmatpush.msra.mxu0 0.0
  %999 = vmatpush.msra.mxu0 0.0
  %1000 = vmatpush.msra.mxu0 0.0
  %1001 = vmatpush.msra.mxu0 0.0
  %1002 = vmatpush.msra.mxu0 0.0
  %1003 = vmatpush.msra.mxu0 0.0
  %1004 = vmatpush.msra.mxu0 0.0
  %1005 = vmatpush.msra.mxu0 0.0
  %1006 = vmatpush.msra.mxu0 0.0
  %1007 = vmatpush.msra.mxu0 0.0
  %1008 = vmatpush.msra.mxu0 0.0
  %1009 = vmatpush.msra.mxu0 0.0
  %1010 = vmatpush.msra.mxu0 %v731
  %1011 = vmatpush.msra.mxu0 %v730
  %1012 = vmatpush.msra.mxu0 %v729
  %1013 = vmatpush.msra.mxu0 %v728
  %1014 = vmatmul.f32.gmra.mxu0 %v996
  %v1015 = vpop.f32.mrf.mxu0
  %v1016 = vadd.f32 %v733, %v1015
  %1017 = vdwg.mxu0
  %v1018 = vadd.f32 %v717, %v1016
  %v1019 = vxor.u32 %v1018, 2147483648
  %v1020 = vmul.f32 %v1019, 1.442695
  %v1021 = vpow.pop %v1020
  %v1022 = vadd.f32 %v1021, 1.0
  %v1023 = vrcp.pop %v1022
  %v1024 = vmul.f32 %v1022, %v1023
  %v1025 = vsub.f32 1.0, %v1024
  %v1026 = vmul.f32 %v1023, %v1025
  %v1027 = vadd.f32 %v1023, %v1026
  %vm1028 = vweird.f32 %v1022
  %vm1029 = vweird.f32 %v1023
  %vm1030 = vmor %vm1028, %vm1029
  %v1031 = vsel %vm1030, %v1023, %v1027
  %v1032 = vand.u32 2147483647, %v1022
  %vm1033 = vcmp.eq.f32.partialorder %v1032, 8.507059e+37
  %v1034 = vand.u32 %v1022, 2147483648
  %v1035 = vor.u32 1.1754944e-38, %v1034
  %v1036 = vsel %vm1033, %v1035, %v1031
  %v1037 = vmul.f32 1.0, %v1036
  %1039 = vrot.lane.b32.xlu0 %v1016, 64
  %v1040 = vpop.permute.xlu0 %1039
  %v1042 = vmul.f32 %v1037, %v1040
  %1044 = vrot.lane.b32.xlu0 %v1042, 64
  %v1045 = vpop.permute.xlu0 %1044
  %v1047 = vadd.f32 %v717, %v1045
  %v1048 = vtanh.pop %v1047
  %v1049 = vsub.f32 1.0, %v1037
  %1051 = vrot.lane.b32.xlu0 %v1048, 96
  %v1052 = vpop.permute.xlu0 %1051
  %v1054 = vmul.f32 %v1049, %v1052
  %v1055 = vmul.f32 %v1037, %v990
  %v1056 = vadd.f32 %v1054, %v1055
  %1058 = vrot.lane.b32.xlu0 %v1056, 96
  %v1059 = vpop.permute.xlu0 %1058
  %1061 = vst.msk [vmem:[#allocation2 + $0x20] sm:$0xff] %vm119, %v1059
  %v1062 = vsel %vm119, %v1059, 0
  %1064 = vmatpush.msra.mxu0 0.0
  %1065 = vmatpush.msra.mxu0 0.0
  %1066 = vmatpush.msra.mxu0 0.0
  %1067 = vmatpush.msra.mxu0 0.0
  %1068 = vmatpush.msra.mxu0 0.0
  %1069 = vmatpush.msra.mxu0 0.0
  %1070 = vmatpush.msra.mxu0 0.0
  %1071 = vmatpush.msra.mxu0 0.0
  %1072 = vmatpush.msra.mxu0 0.0
  %1073 = vmatpush.msra.mxu0 0.0
  %1074 = vmatpush.msra.mxu0 0.0
  %1075 = vmatpush.msra.mxu0 0.0
  %1076 = vmatpush.msra.mxu0 %v731
  %1077 = vmatpush.msra.mxu0 %v730
  %1078 = vmatpush.msra.mxu0 %v729
  %1079 = vmatpush.msra.mxu0 %v728
  %1080 = vmatmul.f32.gmra.mxu0 %v1062
  %v1081 = vpop.f32.mrf.mxu0
  %v1082 = vadd.f32 %v733, %v1081
  %1083 = vdwg.mxu0
  %v1084 = vadd.f32 %v720, %v1082
  %v1085 = vxor.u32 %v1084, 2147483648
  %v1086 = vmul.f32 %v1085, 1.442695
  %v1087 = vpow.pop %v1086
  %v1088 = vadd.f32 %v1087, 1.0
  %v1089 = vrcp.pop %v1088
  %v1090 = vmul.f32 %v1088, %v1089
  %v1091 = vsub.f32 1.0, %v1090
  %v1092 = vmul.f32 %v1089, %v1091
  %v1093 = vadd.f32 %v1089, %v1092
  %vm1094 = vweird.f32 %v1088
  %vm1095 = vweird.f32 %v1089
  %vm1096 = vmor %vm1094, %vm1095
  %v1097 = vsel %vm1096, %v1089, %v1093
  %v1098 = vand.u32 2147483647, %v1088
  %vm1099 = vcmp.eq.f32.partialorder %v1098, 8.507059e+37
  %v1100 = vand.u32 %v1088, 2147483648
  %v1101 = vor.u32 1.1754944e-38, %v1100
  %v1102 = vsel %vm1099, %v1101, %v1097
  %v1103 = vmul.f32 1.0, %v1102
  %1105 = vrot.lane.b32.xlu0 %v1082, 64
  %v1106 = vpop.permute.xlu0 %1105
  %v1108 = vmul.f32 %v1103, %v1106
  %1110 = vrot.lane.b32.xlu0 %v1108, 64
  %v1111 = vpop.permute.xlu0 %1110
  %v1113 = vadd.f32 %v720, %v1111
  %v1114 = vtanh.pop %v1113
  %v1115 = vsub.f32 1.0, %v1103
  %1117 = vrot.lane.b32.xlu0 %v1114, 96
  %v1118 = vpop.permute.xlu0 %1117
  %v1120 = vmul.f32 %v1115, %v1118
  %v1121 = vmul.f32 %v1103, %v1056
  %v1122 = vadd.f32 %v1120, %v1121
  %1124 = vrot.lane.b32.xlu0 %v1122, 96
  %v1125 = vpop.permute.xlu0 %1124
  %1127 = vst.msk [vmem:[#allocation2 + $0x28] sm:$0xff] %vm119, %v1125
  %v1128 = vsel %vm119, %v1125, 0
  %1130 = vmatpush.msra.mxu0 0.0
  %1131 = vmatpush.msra.mxu0 0.0
  %1132 = vmatpush.msra.mxu0 0.0
  %1133 = vmatpush.msra.mxu0 0.0
  %1134 = vmatpush.msra.mxu0 0.0
  %1135 = vmatpush.msra.mxu0 0.0
  %1136 = vmatpush.msra.mxu0 0.0
  %1137 = vmatpush.msra.mxu0 0.0
  %1138 = vmatpush.msra.mxu0 0.0
  %1139 = vmatpush.msra.mxu0 0.0
  %1140 = vmatpush.msra.mxu0 0.0
  %1141 = vmatpush.msra.mxu0 0.0
  %1142 = vmatpush.msra.mxu0 %v731
  %1143 = vmatpush.msra.mxu0 %v730
  %1144 = vmatpush.msra.mxu0 %v729
  %1145 = vmatpush.msra.mxu0 %v728
  %1146 = vmatmul.f32.gmra.mxu0 %v1128
  %v1147 = vpop.f32.mrf.mxu0
  %v1148 = vadd.f32 %v733, %v1147
  %1149 = vdwg.mxu0
  %v1150 = vadd.f32 %v723, %v1148
  %v1151 = vxor.u32 %v1150, 2147483648
  %v1152 = vmul.f32 %v1151, 1.442695
  %v1153 = vpow.pop %v1152
  %v1154 = vadd.f32 %v1153, 1.0
  %v1155 = vrcp.pop %v1154
  %v1156 = vmul.f32 %v1154, %v1155
  %v1157 = vsub.f32 1.0, %v1156
  %v1158 = vmul.f32 %v1155, %v1157
  %v1159 = vadd.f32 %v1155, %v1158
  %vm1160 = vweird.f32 %v1154
  %vm1161 = vweird.f32 %v1155
  %vm1162 = vmor %vm1160, %vm1161
  %v1163 = vsel %vm1162, %v1155, %v1159
  %v1164 = vand.u32 2147483647, %v1154
  %vm1165 = vcmp.eq.f32.partialorder %v1164, 8.507059e+37
  %v1166 = vand.u32 %v1154, 2147483648
  %v1167 = vor.u32 1.1754944e-38, %v1166
  %v1168 = vsel %vm1165, %v1167, %v1163
  %v1169 = vmul.f32 1.0, %v1168
  %1171 = vrot.lane.b32.xlu0 %v1148, 64
  %v1172 = vpop.permute.xlu0 %1171
  %v1174 = vmul.f32 %v1169, %v1172
  %1176 = vrot.lane.b32.xlu0 %v1174, 64
  %v1177 = vpop.permute.xlu0 %1176
  %v1179 = vadd.f32 %v723, %v1177
  %v1180 = vtanh.pop %v1179
  %v1181 = vsub.f32 1.0, %v1169
  %1183 = vrot.lane.b32.xlu0 %v1180, 96
  %v1184 = vpop.permute.xlu0 %1183
  %v1186 = vmul.f32 %v1181, %v1184
  %v1187 = vmul.f32 %v1169, %v1122
  %v1188 = vadd.f32 %v1186, %v1187
  %1190 = vrot.lane.b32.xlu0 %v1188, 96
  %v1191 = vpop.permute.xlu0 %1190
  %1193 = vst.msk [vmem:[#allocation2 + $0x30] sm:$0xff] %vm119, %v1191
  %v1194 = vsel %vm119, %v1191, 0
  %1196 = vmatpush.msra.mxu0 0.0
  %1197 = vmatpush.msra.mxu0 0.0
  %1198 = vmatpush.msra.mxu0 0.0
  %1199 = vmatpush.msra.mxu0 0.0
  %1200 = vmatpush.msra.mxu0 0.0
  %1201 = vmatpush.msra.mxu0 0.0
  %1202 = vmatpush.msra.mxu0 0.0
  %1203 = vmatpush.msra.mxu0 0.0
  %1204 = vmatpush.msra.mxu0 0.0
  %1205 = vmatpush.msra.mxu0 0.0
  %1206 = vmatpush.msra.mxu0 0.0
  %1207 = vmatpush.msra.mxu0 0.0
  %1208 = vmatpush.msra.mxu0 %v731
  %1209 = vmatpush.msra.mxu0 %v730
  %1210 = vmatpush.msra.mxu0 %v729
  %1211 = vmatpush.msra.mxu0 %v728
  %1212 = vmatmul.f32.gmra.mxu0 %v1194
  %v1213 = vpop.f32.mrf.mxu0
  %v1214 = vadd.f32 %v733, %v1213
  %1215 = vdwg.mxu0
  %v1216 = vadd.f32 %v726, %v1214
  %v1217 = vxor.u32 %v1216, 2147483648
  %v1218 = vmul.f32 %v1217, 1.442695
  %v1219 = vpow.pop %v1218
  %v1220 = vadd.f32 %v1219, 1.0
  %v1221 = vrcp.pop %v1220
  %v1222 = vmul.f32 %v1220, %v1221
  %v1223 = vsub.f32 1.0, %v1222
  %v1224 = vmul.f32 %v1221, %v1223
  %v1225 = vadd.f32 %v1221, %v1224
  %vm1226 = vweird.f32 %v1220
  %vm1227 = vweird.f32 %v1221
  %vm1228 = vmor %vm1226, %vm1227
  %v1229 = vsel %vm1228, %v1221, %v1225
  %v1230 = vand.u32 2147483647, %v1220
  %vm1231 = vcmp.eq.f32.partialorder %v1230, 8.507059e+37
  %v1232 = vand.u32 %v1220, 2147483648
  %v1233 = vor.u32 1.1754944e-38, %v1232
  %v1234 = vsel %vm1231, %v1233, %v1229
  %v1235 = vmul.f32 1.0, %v1234
  %1237 = vrot.lane.b32.xlu0 %v1214, 64
  %v1238 = vpop.permute.xlu0 %1237
  %v1240 = vmul.f32 %v1235, %v1238
  %1242 = vrot.lane.b32.xlu0 %v1240, 64
  %v1243 = vpop.permute.xlu0 %1242
  %v1245 = vadd.f32 %v726, %v1243
  %v1246 = vtanh.pop %v1245
  %v1247 = vsub.f32 1.0, %v1235
  %1249 = vrot.lane.b32.xlu0 %v1246, 96
  %v1250 = vpop.permute.xlu0 %1249
  %v1252 = vmul.f32 %v1247, %v1250
  %v1253 = vmul.f32 %v1235, %v1188
  %v1254 = vadd.f32 %v1252, %v1253
  %1256 = vrot.lane.b32.xlu0 %v1254, 96
  %v1257 = vpop.permute.xlu0 %1256
  %1259 = vst.msk [vmem:[#allocation2 + $0x38] sm:$0xff] %vm119, %v1257
  %1260 = vst [vmem:[#allocation3] sm:$0xff] 0.0
  %1261 = vst [vmem:[#allocation3 + $0x8] sm:$0xff] 0.0
  %v1262 = vld [vmem:[#allocation2] sm:$0xff]
  %v1263 = vld [vmem:[#allocation2 + $0x8] sm:$0xff]
  %v1264 = vld [vmem:[#allocation2 + $0x10] sm:$0xff]
  %v1265 = vld [vmem:[#allocation2 + $0x18] sm:$0xff]
  %v1266 = vld [vmem:[#allocation2 + $0x20] sm:$0xff]
  %v1267 = vld [vmem:[#allocation2 + $0x28] sm:$0xff]
  %v1268 = vld [vmem:[#allocation2 + $0x30] sm:$0xff]
  %v1269 = vld [vmem:[#allocation2 + $0x38] sm:$0xff]
  %vm1270 = vcmask 253952
  %1271 = vst.msk [vmem:[#allocation3] sm:$0x1] %vm1270, %v1262
  %v1273 = vrot.slane %v1262, 1
  %1274 = vrot.lane.b32.xlu0 %v1273, 32
  %v1275 = vpop.permute.xlu0 %1274
  %vm1277 = vcmask 516352
  %1278 = vst.msk [vmem:[#allocation3] sm:$0x1] %vm1277, %v1275
  %1280 = vrot.lane.b32.xlu0 %v1263, 64
  %v1281 = vpop.permute.xlu0 %1280
  %vm1283 = vcmask 778752
  %1284 = vst.msk [vmem:[#allocation3] sm:$0x1] %vm1283, %v1281
  %v1285 = vrot.slane %v1263, 1
  %1286 = vrot.lane.b32.xlu0 %v1285, 96
  %v1287 = vpop.permute.xlu0 %1286
  %vm1289 = vcmask 1041152
  %1290 = vst.msk [vmem:[#allocation3] sm:$0x1] %vm1289, %v1287
  %1291 = vst.msk [vmem:[#allocation3 + $0x8] sm:$0x1] %vm1270, %v1264
  %v1293 = vrot.slane %v1264, 1
  %1294 = vrot.lane.b32.xlu0 %v1293, 32
  %v1295 = vpop.permute.xlu0 %1294
  %1297 = vst.msk [vmem:[#allocation3 + $0x8] sm:$0x1] %vm1277, %v1295
  %1299 = vrot.lane.b32.xlu0 %v1265, 64
  %v1300 = vpop.permute.xlu0 %1299
  %1302 = vst.msk [vmem:[#allocation3 + $0x8] sm:$0x1] %vm1283, %v1300
  %v1303 = vrot.slane %v1265, 1
  %1304 = vrot.lane.b32.xlu0 %v1303, 96
  %v1305 = vpop.permute.xlu0 %1304
  %1307 = vst.msk [vmem:[#allocation3 + $0x8] sm:$0x1] %vm1289, %v1305
  %1308 = vst.msk [vmem:[#allocation3 + $0x1] sm:$0x1] %vm1270, %v1266
  %v1310 = vrot.slane %v1266, 1
  %1311 = vrot.lane.b32.xlu0 %v1310, 32
  %v1312 = vpop.permute.xlu0 %1311
  %1314 = vst.msk [vmem:[#allocation3 + $0x1] sm:$0x1] %vm1277, %v1312
  %1316 = vrot.lane.b32.xlu0 %v1267, 64
  %v1317 = vpop.permute.xlu0 %1316
  %1319 = vst.msk [vmem:[#allocation3 + $0x1] sm:$0x1] %vm1283, %v1317
  %v1320 = vrot.slane %v1267, 1
  %1321 = vrot.lane.b32.xlu0 %v1320, 96
  %v1322 = vpop.permute.xlu0 %1321
  %1324 = vst.msk [vmem:[#allocation3 + $0x1] sm:$0x1] %vm1289, %v1322
  %1325 = vst.msk [vmem:[#allocation3 + $0x9] sm:$0x1] %vm1270, %v1268
  %v1327 = vrot.slane %v1268, 1
  %1328 = vrot.lane.b32.xlu0 %v1327, 32
  %v1329 = vpop.permute.xlu0 %1328
  %1331 = vst.msk [vmem:[#allocation3 + $0x9] sm:$0x1] %vm1277, %v1329
  %1333 = vrot.lane.b32.xlu0 %v1269, 64
  %v1334 = vpop.permute.xlu0 %1333
  %1336 = vst.msk [vmem:[#allocation3 + $0x9] sm:$0x1] %vm1283, %v1334
  %v1337 = vrot.slane %v1269, 1
  %1338 = vrot.lane.b32.xlu0 %v1337, 96
  %v1339 = vpop.permute.xlu0 %1338
  %1341 = vst.msk [vmem:[#allocation3 + $0x9] sm:$0x1] %vm1289, %v1339
  %v1342 = vld [vmem:[#allocation3] sm:$0xff]
  %v1343 = vld [vmem:[#allocation3 + $0x8] sm:$0xff]
  %v1344 = vld [vmem:[%s7] sm:$0xff]
  %v1345 = vld [vmem:[%s7 + $0x8] sm:$0xff]
  %v1346 = vld [vmem:[%s7 + $0x10] sm:$0xff]
  %v1347 = vld [vmem:[%s7 + $0x18] sm:$0xff]
  %v1348 = vld [vmem:[%s7 + $0x20] sm:$0xff]
  %v1349 = vld [vmem:[%s7 + $0x28] sm:$0xff]
  %v1350 = vld [vmem:[%s7 + $0x30] sm:$0xff]
  %v1351 = vld [vmem:[%s7 + $0x38] sm:$0xff]
  %v1352 = vld [vmem:[%s7 + $0x40] sm:$0xff]
  %v1353 = vld [vmem:[%s7 + $0x48] sm:$0xff]
  %v1354 = vld [vmem:[%s7 + $0x50] sm:$0xff]
  %v1355 = vld [vmem:[%s7 + $0x58] sm:$0xff]
  %v1356 = vld [vmem:[%s7 + $0x60] sm:$0xff]
  %v1357 = vld [vmem:[%s7 + $0x68] sm:$0xff]
  %v1358 = vld [vmem:[%s7 + $0x70] sm:$0xff]
  %v1359 = vld [vmem:[%s7 + $0x78] sm:$0xff]
  %v1360 = vld [vmem:[%s7 + $0x80] sm:$0xff]
  %v1361 = vld [vmem:[%s7 + $0x88] sm:$0xff]
  %v1362 = vld [vmem:[%s7 + $0x90] sm:$0xff]
  %v1363 = vld [vmem:[%s7 + $0x98] sm:$0xff]
  %v1364 = vld [vmem:[%s7 + $0xa0] sm:$0xff]
  %v1365 = vld [vmem:[%s7 + $0xa8] sm:$0xff]
  %v1366 = vld [vmem:[%s7 + $0xb0] sm:$0xff]
  %v1367 = vld [vmem:[%s7 + $0xb8] sm:$0xff]
  %v1368 = vld [vmem:[%s7 + $0xc0] sm:$0xff]
  %v1369 = vld [vmem:[%s7 + $0xc8] sm:$0xff]
  %v1370 = vld [vmem:[%s7 + $0xd0] sm:$0xff]
  %v1371 = vld [vmem:[%s7 + $0xd8] sm:$0xff]
  %v1372 = vld [vmem:[%s7 + $0xe0] sm:$0xff]
  %v1373 = vld [vmem:[%s7 + $0xe8] sm:$0xff]
  %v1374 = vld [vmem:[%s7 + $0xf0] sm:$0xff]
  %v1375 = vld [vmem:[%s7 + $0xf8] sm:$0xff]
  %v1376 = vld [vmem:[%s8] sm:$0x1]
  %v1378 = vperm.slane %v1376, 0
  %1380 = vmatpush.msra.mxu0 %v1359
  %1381 = vmatpush.msra.mxu0 %v1358
  %1382 = vmatpush.msra.mxu0 %v1357
  %1383 = vmatpush.msra.mxu0 %v1356
  %1384 = vmatpush.msra.mxu0 %v1355
  %1385 = vmatpush.msra.mxu0 %v1354
  %1386 = vmatpush.msra.mxu0 %v1353
  %1387 = vmatpush.msra.mxu0 %v1352
  %1388 = vmatpush.msra.mxu0 %v1351
  %1389 = vmatpush.msra.mxu0 %v1350
  %1390 = vmatpush.msra.mxu0 %v1349
  %1391 = vmatpush.msra.mxu0 %v1348
  %1392 = vmatpush.msra.mxu0 %v1347
  %1393 = vmatpush.msra.mxu0 %v1346
  %1394 = vmatpush.msra.mxu0 %v1345
  %1395 = vmatpush.msra.mxu0 %v1344
  %1396 = vmatmul.f32.gmra.mxu0 %v1342
  %v1397 = vpop.f32.mrf.mxu0
  %v1398 = vadd.f32 %v1378, %v1397
  %1399 = vdwg.mxu0
  %1400 = vmatpush.msra.mxu0 %v1375
  %1401 = vmatpush.msra.mxu0 %v1374
  %1402 = vmatpush.msra.mxu0 %v1373
  %1403 = vmatpush.msra.mxu0 %v1372
  %1404 = vmatpush.msra.mxu0 %v1371
  %1405 = vmatpush.msra.mxu0 %v1370
  %1406 = vmatpush.msra.mxu0 %v1369
  %1407 = vmatpush.msra.mxu0 %v1368
  %1408 = vmatpush.msra.mxu0 %v1367
  %1409 = vmatpush.msra.mxu0 %v1366
  %1410 = vmatpush.msra.mxu0 %v1365
  %1411 = vmatpush.msra.mxu0 %v1364
  %1412 = vmatpush.msra.mxu0 %v1363
  %1413 = vmatpush.msra.mxu0 %v1362
  %1414 = vmatpush.msra.mxu0 %v1361
  %1415 = vmatpush.msra.mxu0 %v1360
  %1416 = vmatmul.f32.gmra.mxu0 %v1343
  %v1417 = vpop.f32.mrf.mxu0
  %v1418 = vadd.f32 %v1398, %v1417
  %1419 = vdwg.mxu0
  %1420 = vst [vmem:[%s9] sm:$0xff] %v1418
  // Predicated region
  $region38: #{simple_gru_forward.1} parent=0 // pred_check
    _
  $region39: #{simple_gru_forward.1} parent=0 // pred_check_branch
    %1422 = sbr.rel (0) target = $region41
  $region40: #{simple_gru_forward.1} parent=0 // pred_region
    _
  $region41: #{simple_gru_forward.1} parent=0 // pred_fallthru
    _
  // Predicated region
  $region42: #{simple_gru_forward.1} parent=0 // pred_check
    _
  $region43: #{simple_gru_forward.1} parent=0 // pred_check_branch
    %1424 = sbr.rel (0) target = $region45
  $region44: #{simple_gru_forward.1} parent=0 // pred_region
    _
  $region45: #{simple_gru_forward.1} parent=0 // pred_fallthru
    _

</llo_original>
